<compile_context>
chip_gen: v6e
topology: v6e:2x2x1
jax: 0.10.0
libtpu: 0.0.40
codegen_flags: <defaults>
</compile_context>

<pallas_src>
import functools

import jax
import jax.numpy as jnp
from jax.experimental import pallas as pl
from jax.experimental.pallas import tpu as pltpu


# ----------------------------------------------------------------------------
# 1. Fused bidirectional LSTM kernel.
#    Grid iterates sequentially over time; both directions advance each step
#    (forward corresponds to time t, backward to time S-1-t — its inputs were
#    pre-reversed on the host). Gate columns are interleaved
#    [i_f,i_b,f_f,f_b,g_f,g_b,o_f,o_b] so a single (B,2H)@(2H,8H) matmul plus
#    one joint elementwise update handles both directions. The per-step output
#    is one lane-dense (B, 2H) slab [h_fwd(t) | h_bwd(S-1-t)].
# ----------------------------------------------------------------------------
def _bilstm_kernel(xw_ref, whh_ref, o_ref, h_scr, c_scr):
    t = pl.program_id(0)

    @pl.when(t == 0)
    def _():
        h_scr[...] = jnp.zeros_like(h_scr)
        c_scr[...] = jnp.zeros_like(c_scr)

    H2 = h_scr.shape[-1]                                   # 2H (fwd | bwd)
    gates = xw_ref[0] + jnp.dot(h_scr[...], whh_ref[...],
                                preferred_element_type=jnp.float32)  # (B, 8H)
    i_g = jax.nn.sigmoid(gates[:, 0 * H2:1 * H2])
    f_g = jax.nn.sigmoid(gates[:, 1 * H2:2 * H2])
    g_g = jnp.tanh(gates[:, 2 * H2:3 * H2])
    o_g = jax.nn.sigmoid(gates[:, 3 * H2:4 * H2])
    c_new = f_g * c_scr[...] + i_g * g_g
    h_new = o_g * jnp.tanh(c_new)
    c_scr[...] = c_new
    h_scr[...] = h_new

    o_ref[0] = h_new.astype(o_ref.dtype)                   # [fwd@t | bwd@S-1-t]


def bilstm(xw, whh_comb):
    """xw: (S, B, 8H) gate-interleaved pre-projected inputs (fwd at t, bwd at
    S-1-t); whh_comb: (2H, 8H) block-diag recurrent weights. Returns a single
    (S, B, 2H) array whose [:, :, :H] half is the forward hidden at time t and
    whose [:, :, H:] half is the backward hidden at time S-1-t (host flips)."""
    S, B, G = xw.shape
    H2 = whh_comb.shape[0]
    return pl.pallas_call(
        _bilstm_kernel,
        out_shape=jax.ShapeDtypeStruct((S, B, H2), jnp.float32),
        grid_spec=pltpu.PrefetchScalarGridSpec(
            num_scalar_prefetch=0,
            grid=(S,),
            in_specs=[
                pl.BlockSpec((1, B, G), lambda t: (t, 0, 0)),
                pl.BlockSpec((H2, G), lambda t: (0, 0)),
            ],
            out_specs=pl.BlockSpec((1, B, H2), lambda t: (t, 0, 0)),
            scratch_shapes=[
                pltpu.VMEM((B, H2), jnp.float32),   # h state  [fwd | bwd]
                pltpu.VMEM((B, H2), jnp.float32),   # c state  [fwd | bwd]
            ],
        ),
        compiler_params=pltpu.CompilerParams(
            dimension_semantics=("arbitrary",)),
    )(xw, whh_comb)


# ----------------------------------------------------------------------------
# 2. Single fused post-LSTM kernel (no grid, everything VMEM resident):
#    self soft-attn align -> SFU fusion (fused r/g matmul) -> masked mean pool
#    -> all label heads (stacked w1, block-diagonal w2) -> (B, L*C) logits.
# ----------------------------------------------------------------------------
def _fused_post_kernel(enc_ref, infm_ref, seqm_ref, wrg_ref, brg_ref,
                       w1_ref, b1_ref, w2_ref, b2_ref, o_ref):
    x = enc_ref[...]                                        # (B, S, D)
    B, S, D = x.shape

    # --- self soft-attention align ---
    scores = jnp.einsum("bqd,bkd->bqk", x, x,
                        preferred_element_type=jnp.float32)  # (B, S, S)
    scores = scores + infm_ref[...][:, None, :]
    scores = scores - jnp.max(scores, axis=-1, keepdims=True)
    p = jnp.exp(scores)
    attn = p * pl.reciprocal(jnp.sum(p, axis=-1, keepdims=True), approx=True)
    y = jnp.einsum("bqk,bkd->bqd", attn, x,
                   preferred_element_type=jnp.float32)       # (B, S, D)

    # --- SFU fusion (r and g computed in one fused matmul) ---
    xf = x.reshape(B * S, D)
    yf = y.reshape(B * S, D)
    feats = jnp.concatenate([xf, yf, xf * yf, xf - yf], axis=-1)   # (BS, 4D)
    rg = (jnp.dot(feats, wrg_ref[...], preferred_element_type=jnp.float32)
          + brg_ref[...])                                           # (BS, 2D)
    r = jnp.tanh(rg[:, :D])
    g = jax.nn.sigmoid(rg[:, D:])
    fusion = g * r + (1.0 - g) * xf                                 # (BS, D)

    # --- masked mean pool (computed once for all heads) ---
    m = seqm_ref[...]                                               # (B, S)
    denom = jnp.maximum(jnp.sum(m, axis=-1, keepdims=True), 1.0)    # (B, 1)
    pooled = jnp.sum(fusion.reshape(B, S, D) * m[:, :, None], axis=1) / denom

    # --- all ExclusiveUnit heads in one shot ---
    h = jnp.maximum(
        jnp.dot(pooled, w1_ref[...], preferred_element_type=jnp.float32)
        + b1_ref[...], 0.0)                                          # (B, L*U)
    logits = (jnp.dot(h, w2_ref[...], preferred_element_type=jnp.float32)
              + b2_ref[...])                                         # (B, L*C)
    o_ref[...] = logits.astype(o_ref.dtype)


def fused_attn_sfu_heads(encoded, inf_mask, seq_mask,
                         w_rg, b_rg, w1s, b1s, w2bd, b2s):
    """encoded: (B,S,D); masks: (B,S); returns packed logits (B, L*C)."""
    B = encoded.shape[0]
    LC = w2bd.shape[-1]
    return pl.pallas_call(
        _fused_post_kernel,
        out_shape=jax.ShapeDtypeStruct((B, LC), jnp.float32),
    )(encoded, inf_mask, seq_mask, w_rg, b_rg, w1s, b1s, w2bd, b2s)


# ----------------------------------------------------------------------------
# Parameters
# ----------------------------------------------------------------------------
def init_params(key, vocab, embed_dim, hidden, num_labels, unit_linear, classes):
    D = 2 * hidden
    ks = jax.random.split(key, 16)

    def w(k, shape, fan_in):
        return jax.random.normal(k, shape, jnp.float32) / jnp.sqrt(fan_in)

    return {
        "embed": w(ks[0], (vocab, embed_dim), embed_dim),
        # forward / backward LSTM (PyTorch gate order i,f,g,o; b = b_ih + b_hh)
        "wih_f": w(ks[1], (embed_dim, 4 * hidden), embed_dim),
        "whh_f": w(ks[2], (hidden, 4 * hidden), hidden),
        "b_f": jnp.zeros((1, 4 * hidden), jnp.float32),
        "wih_b": w(ks[3], (embed_dim, 4 * hidden), embed_dim),
        "whh_b": w(ks[4], (hidden, 4 * hidden), hidden),
        "b_b": jnp.zeros((1, 4 * hidden), jnp.float32),
        # SFU
        "w_r": w(ks[5], (4 * D, D), 4 * D),
        "b_r": jnp.zeros((1, D), jnp.float32),
        "w_g": w(ks[6], (4 * D, D), 4 * D),
        "b_g": jnp.zeros((1, D), jnp.float32),
        # Exclusive units (stacked over num_labels)
        "w1": w(ks[7], (num_labels, D, unit_linear), D),
        "b1": jnp.zeros((num_labels, 1, unit_linear), jnp.float32),
        "w2": w(ks[8], (num_labels, unit_linear, classes), unit_linear),
        "b2": jnp.zeros((num_labels, 1, classes), jnp.float32),
    }


def prepare_params(p):
    """Build the kernel-ready fused/interleaved weights (done once)."""
    H = p["whh_f"].shape[0]
    L, D, U = p["w1"].shape
    C = p["w2"].shape[-1]

    # block-diagonal recurrent weight with gate-interleaved columns:
    # columns [i_f, i_b, f_f, f_b, g_f, g_b, o_f, o_b], each of width H;
    # rows 0:H are forward h, rows H:2H are backward h.
    whh_comb = jnp.zeros((2 * H, 8 * H), jnp.float32)
    for k in range(4):
        whh_comb = whh_comb.at[:H, 2 * k * H:(2 * k + 1) * H].set(
            p["whh_f"][:, k * H:(k + 1) * H])
        whh_comb = whh_comb.at[H:, (2 * k + 1) * H:(2 * k + 2) * H].set(
            p["whh_b"][:, k * H:(k + 1) * H])

    # block-diagonal second-layer head weight -> single (L*U, L*C) matmul.
    w2bd = jnp.zeros((L * U, L * C), jnp.float32)
    for l in range(L):
        w2bd = w2bd.at[l * U:(l + 1) * U, l * C:(l + 1) * C].set(p["w2"][l])

    return {
        "embed": p["embed"],
        "wih_f": p["wih_f"], "b_f": p["b_f"],
        "wih_b": p["wih_b"], "b_b": p["b_b"],
        "whh_comb": whh_comb,
        "w_rg": jnp.concatenate([p["w_r"], p["w_g"]], axis=-1),   # (4D, 2D)
        "b_rg": jnp.concatenate([p["b_r"], p["b_g"]], axis=-1),   # (1, 2D)
        "w1s": jnp.transpose(p["w1"], (1, 0, 2)).reshape(D, L * U),
        "b1s": p["b1"].reshape(1, L * U),
        "w2bd": w2bd,
        "b2s": p["b2"].reshape(1, L * C),
    }


# ----------------------------------------------------------------------------
# Full forward (inference path)
# ----------------------------------------------------------------------------
@functools.partial(jax.jit, static_argnames=("num_labels",))
def model_forward(kp, word_ids, seq_mask, inf_mask, *, num_labels):
    hp = jax.lax.Precision.HIGHEST
    H = kp["whh_comb"].shape[0] // 2

    embed = jnp.take(kp["embed"], word_ids, axis=0)               # (B, S, E)
    x_tm = jnp.transpose(embed, (1, 0, 2))                        # (S, B, E)

    # Input projection hoisted out of the recurrence: one big matmul per dir.
    xw_f = jnp.einsum("sbe,eg->sbg", x_tm, kp["wih_f"],
                      precision=hp) + kp["b_f"]                   # (S, B, 4H)
    xw_b = jnp.einsum("sbe,eg->sbg", x_tm[::-1], kp["wih_b"],
                      precision=hp) + kp["b_b"]                   # (S, B, 4H)
    # Interleave gate blocks -> [i_f, i_b, f_f, f_b, g_f, g_b, o_f, o_b].
    parts = []
    for k in range(4):
        parts.append(xw_f[..., k * H:(k + 1) * H])
        parts.append(xw_b[..., k * H:(k + 1) * H])
    xw = jnp.concatenate(parts, axis=-1)                          # (S, B, 8H)

    # Fused bidirectional LSTM (single sequential Pallas grid over time).
    h_all = bilstm(xw, kp["whh_comb"])                            # (S, B, 2H)
    h_fwd = h_all[:, :, :H]                                       # time-aligned
    h_bwd = h_all[::-1, :, H:]                                    # realign bwd
    encoded = jnp.transpose(
        jnp.concatenate([h_fwd, h_bwd], axis=-1), (1, 0, 2))      # (B, S, 2H)

    # Attention + SFU + pooling + all heads in one VMEM-resident kernel.
    logits_flat = fused_attn_sfu_heads(
        encoded, inf_mask, seq_mask,
        kp["w_rg"], kp["b_rg"], kp["w1s"], kp["b1s"],
        kp["w2bd"], kp["b2s"])                                    # (B, L*C)

    B = logits_flat.shape[0]
    C = logits_flat.shape[-1] // num_labels
    return jnp.transpose(logits_flat.reshape(B, num_labels, C), (1, 0, 2))


# ----------------------------------------------------------------------------
# Pure-JAX reference (same math, no Pallas) for a correctness self-check.
# ----------------------------------------------------------------------------
def reference_forward(p, word_ids, seq_mask, inf_mask, num_labels):
    hp = jax.lax.Precision.HIGHEST
    embed = jnp.take(p["embed"], word_ids, axis=0)

    def lstm_dir(x_tm, wih, whh, b):
        Hh = whh.shape[0]

        def step(carry, x_t):
            h, c = carry
            gates = (jnp.dot(x_t, wih, precision=hp)
                     + jnp.dot(h, whh, precision=hp) + b)
            i = jax.nn.sigmoid(gates[:, :Hh])
            f = jax.nn.sigmoid(gates[:, Hh:2 * Hh])
            g = jnp.tanh(gates[:, 2 * Hh:3 * Hh])
            o = jax.nn.sigmoid(gates[:, 3 * Hh:])
            c = f * c + i * g
            h = o * jnp.tanh(c)
            return (h, c), h

        B = x_tm.shape[1]
        init = (jnp.zeros((B, Hh), jnp.float32), jnp.zeros((B, Hh), jnp.float32))
        _, hs = jax.lax.scan(step, init, x_tm)
        return hs

    x_tm = jnp.transpose(embed, (1, 0, 2))
    hf = lstm_dir(x_tm, p["wih_f"], p["whh_f"], p["b_f"])
    hb = lstm_dir(x_tm[::-1], p["wih_b"], p["whh_b"], p["b_b"])[::-1]
    enc = jnp.transpose(jnp.concatenate([hf, hb], axis=-1), (1, 0, 2))

    scores = jnp.einsum("bqd,bkd->bqk", enc, enc, precision=hp) + inf_mask[:, None, :]
    attn = jax.nn.softmax(scores, axis=-1)
    align = jnp.einsum("bqk,bkd->bqd", attn, enc, precision=hp)
    feats = jnp.concatenate([enc, align, enc * align, enc - align], axis=-1)
    r = jnp.tanh(jnp.einsum("bsf,fd->bsd", feats, p["w_r"], precision=hp) + p["b_r"])
    g = jax.nn.sigmoid(jnp.einsum("bsf,fd->bsd", feats, p["w_g"], precision=hp) + p["b_g"])
    fusion = g * r + (1.0 - g) * enc
    denom = jnp.maximum(jnp.sum(seq_mask, axis=-1, keepdims=True), 1.0)
    pooled = jnp.sum(fusion * seq_mask[:, :, None], axis=1) / denom
    outs = []
    for l in range(num_labels):
        h1 = jax.nn.relu(jnp.dot(pooled, p["w1"][l], precision=hp) + p["b1"][l])
        outs.append(jnp.dot(h1, p["w2"][l], precision=hp) + p["b2"][l])
    return jnp.stack(outs, axis=0)


if __name__ == "__main__":
    # small config consistent with the module
    VOCAB = 100
    EMBED_DIM = 32          # config.subword_embed_dim
    HIDDEN = 32             # config.rnn_hidden_size  (D = 2H = 64)
    NUM_LABELS = 3          # config.num_labels
    NUM_CLASSES = 4         # config.num_classes
    UNIT_LINEAR = 32        # config.unit_linear_size
    B, S = 2, 8

    key = jax.random.PRNGKey(0)
    k_par, k_ids = jax.random.split(key, 2)
    params = init_params(k_par, VOCAB, EMBED_DIM, HIDDEN, NUM_LABELS,
                         UNIT_LINEAR, NUM_CLASSES)
    kparams = prepare_params(params)

    word_ids = jax.random.randint(k_ids, (B, S), 0, VOCAB)
    seq_len = jnp.array([S, S - 3], dtype=jnp.int32)
    pos = jnp.arange(S)[None, :]
    seq_mask = (pos < seq_len[:, None]).astype(jnp.float32)       # (B, S)
    inf_mask = (1.0 - seq_mask) * (-1e9)                          # (B, S)

    logits = model_forward(kparams, word_ids, seq_mask, inf_mask,
                           num_labels=NUM_LABELS)                 # (L, B, C)
    jax.block_until_ready(logits)

    # correctness self-check against the pure-JAX reference
    ref = reference_forward(params, word_ids, seq_mask, inf_mask, NUM_LABELS)
    assert logits.shape == ref.shape
    assert bool(jnp.all(jnp.isfinite(logits)))
    assert bool(jnp.allclose(logits, ref, rtol=2e-2, atol=2e-2)), \
        "Pallas output mismatch vs pure-JAX reference"

    # forward returns {'logits': [per-label (B, C) logits]} in inference mode
    outputs = {"logits": [logits[i] for i in range(NUM_LABELS)]}
    assert outputs["logits"][0].shape == (B, NUM_CLASSES)
    print("KERNEL_OK")
</pallas_src>

<mosaic_0001>
module attributes {stable_mosaic.version = 11 : i64} {
  func.func @_bilstm_kernel(%arg0: i32, %arg1: memref<1x2x256xf32, #tpu.memory_space<vmem>>, %arg2: memref<64x256xf32, #tpu.memory_space<vmem>>, %arg3: memref<1x2x64xf32, #tpu.memory_space<vmem>>, %arg4: memref<2x64xf32, #tpu.memory_space<vmem>>, %arg5: memref<2x64xf32, #tpu.memory_space<vmem>>) attributes {dimension_semantics = [#tpu.dimension_semantics<arbitrary>], iteration_bounds = array<i64: 8>, scalar_prefetch = 0 : i64, scratch_operands = 2 : i64, tpu.core_type = #tpu.core_type<tc>, window_params = [{transform_indices = @transform_0, window_bounds = array<i64: 1, 2, 256>}, {pipeline_mode = #tpu.pipeline_mode<synchronous>, transform_indices = @transform_1, window_bounds = array<i64: 64, 256>}, {transform_indices = @transform_2, window_bounds = array<i64: 1, 2, 64>}]} {
    %c0_i32 = arith.constant 0 : i32
    %0 = arith.cmpi eq, %arg0, %c0_i32 : i32
    %1 = arith.extui %0 : i1 to i32
    %c0_i32_0 = arith.constant 0 : i32
    %2 = arith.cmpi ne, %1, %c0_i32_0 : i32
    scf.if %2 {
      %cst_19 = arith.constant 0.000000e+00 : f32
      %40 = vector.broadcast %cst_19 : f32 to vector<2x64xf32>
      %c0_20 = arith.constant 0 : index
      %c0_21 = arith.constant 0 : index
      %41 = vector.load %arg4[%c0_20, %c0_21] : memref<2x64xf32, #tpu.memory_space<vmem>>, vector<2x64xf32>
      tpu.vector_store %arg4[%c0_20, %c0_21], %40 {strides = array<i32>} : memref<2x64xf32, #tpu.memory_space<vmem>>, vector<2x64xf32>,
      %cst_22 = arith.constant 0.000000e+00 : f32
      %42 = vector.broadcast %cst_22 : f32 to vector<2x64xf32>
      %c0_23 = arith.constant 0 : index
      %c0_24 = arith.constant 0 : index
      %43 = vector.load %arg5[%c0_23, %c0_24] : memref<2x64xf32, #tpu.memory_space<vmem>>, vector<2x64xf32>
      tpu.vector_store %arg5[%c0_23, %c0_24], %42 {strides = array<i32>} : memref<2x64xf32, #tpu.memory_space<vmem>>, vector<2x64xf32>,
    } else {
    }
    %c0 = arith.constant 0 : index
    %c0_1 = arith.constant 0 : index
    %c0_2 = arith.constant 0 : index
    %3 = vector.load %arg1[%c0, %c0_1, %c0_2] : memref<1x2x256xf32, #tpu.memory_space<vmem>>, vector<1x2x256xf32>
    %4 = vector.shape_cast %3 : vector<1x2x256xf32> to vector<2x256xf32>
    %c0_3 = arith.constant 0 : index
    %c0_4 = arith.constant 0 : index
    %5 = vector.load %arg4[%c0_3, %c0_4] : memref<2x64xf32, #tpu.memory_space<vmem>>, vector<2x64xf32>
    %c0_5 = arith.constant 0 : index
    %c0_6 = arith.constant 0 : index
    %6 = vector.load %arg2[%c0_5, %c0_6] : memref<64x256xf32, #tpu.memory_space<vmem>>, vector<64x256xf32>
    %cst = arith.constant dense<0.000000e+00> : vector<2x256xf32>
    %7 = tpu.matmul %5, %6, %cst {dimension_numbers = #tpu.dot_dimension_numbers<[1], [0], [0], [1], [0, 0, 1, 1], [], []>} : vector<2x64xf32>, vector<64x256xf32>, vector<2x256xf32> -> vector<2x256xf32>
    %8 = arith.addf %4, %7 : vector<2x256xf32>
    %9 = vector.extract_strided_slice %8 {offsets = [0, 0], sizes = [2, 64], strides = [1, 1]} : vector<2x256xf32> to vector<2x64xf32>
    %10 = arith.negf %9 : vector<2x64xf32>
    %11 = math.exp %10 : vector<2x64xf32>
    %cst_7 = arith.constant 1.000000e+00 : f32
    %12 = vector.broadcast %cst_7 : f32 to vector<2x64xf32>
    %13 = arith.addf %12, %11 : vector<2x64xf32>
    %14 = arith.divf %12, %13 : vector<2x64xf32>
    %15 = vector.extract_strided_slice %8 {offsets = [0, 64], sizes = [2, 64], strides = [1, 1]} : vector<2x256xf32> to vector<2x64xf32>
    %16 = arith.negf %15 : vector<2x64xf32>
    %17 = math.exp %16 : vector<2x64xf32>
    %cst_8 = arith.constant 1.000000e+00 : f32
    %18 = vector.broadcast %cst_8 : f32 to vector<2x64xf32>
    %19 = arith.addf %18, %17 : vector<2x64xf32>
    %20 = arith.divf %18, %19 : vector<2x64xf32>
    %21 = vector.extract_strided_slice %8 {offsets = [0, 128], sizes = [2, 64], strides = [1, 1]} : vector<2x256xf32> to vector<2x64xf32>
    %22 = math.tanh %21 : vector<2x64xf32>
    %23 = vector.extract_strided_slice %8 {offsets = [0, 192], sizes = [2, 64], strides = [1, 1]} : vector<2x256xf32> to vector<2x64xf32>
    %24 = arith.negf %23 : vector<2x64xf32>
    %25 = math.exp %24 : vector<2x64xf32>
    %cst_9 = arith.constant 1.000000e+00 : f32
    %26 = vector.broadcast %cst_9 : f32 to vector<2x64xf32>
    %27 = arith.addf %26, %25 : vector<2x64xf32>
    %28 = arith.divf %26, %27 : vector<2x64xf32>
    %c0_10 = arith.constant 0 : index
    %c0_11 = arith.constant 0 : index
    %29 = vector.load %arg5[%c0_10, %c0_11] : memref<2x64xf32, #tpu.memory_space<vmem>>, vector<2x64xf32>
    %30 = arith.mulf %20, %29 : vector<2x64xf32>
    %31 = arith.mulf %14, %22 : vector<2x64xf32>
    %32 = arith.addf %30, %31 : vector<2x64xf32>
    %33 = math.tanh %32 : vector<2x64xf32>
    %34 = arith.mulf %28, %33 : vector<2x64xf32>
    %c0_12 = arith.constant 0 : index
    %c0_13 = arith.constant 0 : index
    %35 = vector.load %arg5[%c0_12, %c0_13] : memref<2x64xf32, #tpu.memory_space<vmem>>, vector<2x64xf32>
    tpu.vector_store %arg5[%c0_12, %c0_13], %32 {strides = array<i32>} : memref<2x64xf32, #tpu.memory_space<vmem>>, vector<2x64xf32>,
    %c0_14 = arith.constant 0 : index
    %c0_15 = arith.constant 0 : index
    %36 = vector.load %arg4[%c0_14, %c0_15] : memref<2x64xf32, #tpu.memory_space<vmem>>, vector<2x64xf32>
    tpu.vector_store %arg4[%c0_14, %c0_15], %34 {strides = array<i32>} : memref<2x64xf32, #tpu.memory_space<vmem>>, vector<2x64xf32>,
    %c0_16 = arith.constant 0 : index
    %c0_17 = arith.constant 0 : index
    %c0_18 = arith.constant 0 : index
    %37 = vector.load %arg3[%c0_16, %c0_17, %c0_18] : memref<1x2x64xf32, #tpu.memory_space<vmem>>, vector<1x2x64xf32>
    %38 = vector.shape_cast %37 : vector<1x2x64xf32> to vector<2x64xf32>
    %39 = vector.shape_cast %34 : vector<2x64xf32> to vector<1x2x64xf32>
    tpu.vector_store %arg3[%c0_16, %c0_17, %c0_18], %39 {strides = array<i32>} : memref<1x2x64xf32, #tpu.memory_space<vmem>>, vector<1x2x64xf32>,
    return
  }
  func.func @transform_0(%arg0: i32) -> (i32, i32, i32) {
    %c0_i32 = arith.constant 0 : i32
    %c0_i32_0 = arith.constant 0 : i32
    %c0_i32_1 = arith.constant 0 : i32
    return %arg0, %c0_i32, %c0_i32_0 : i32, i32, i32
  }
  func.func @transform_1(%arg0: i32) -> (i32, i32) {
    %c0_i32 = arith.constant 0 : i32
    %c0_i32_0 = arith.constant 0 : i32
    %c0_i32_1 = arith.constant 0 : i32
    return %c0_i32, %c0_i32_0 : i32, i32
  }
  func.func @transform_2(%arg0: i32) -> (i32, i32, i32) {
    %c0_i32 = arith.constant 0 : i32
    %c0_i32_0 = arith.constant 0 : i32
    %c0_i32_1 = arith.constant 0 : i32
    return %arg0, %c0_i32, %c0_i32_0 : i32, i32, i32
  }
}

module attributes {stable_mosaic.version = 11 : i64} {
  func.func @_fused_post_kernel(%arg0: memref<2x8x64xf32, #tpu.memory_space<vmem>>, %arg1: memref<2x8xf32, #tpu.memory_space<vmem>>, %arg2: memref<2x8xf32, #tpu.memory_space<vmem>>, %arg3: memref<256x128xf32, #tpu.memory_space<vmem>>, %arg4: memref<1x128xf32, #tpu.memory_space<vmem>>, %arg5: memref<64x96xf32, #tpu.memory_space<vmem>>, %arg6: memref<1x96xf32, #tpu.memory_space<vmem>>, %arg7: memref<96x12xf32, #tpu.memory_space<vmem>>, %arg8: memref<1x12xf32, #tpu.memory_space<vmem>>, %arg9: memref<2x12xf32, #tpu.memory_space<vmem>>) attributes {dimension_semantics = [], scalar_prefetch = 0 : i64, scratch_operands = 0 : i64, tpu.core_type = #tpu.core_type<tc>} {
    %c0 = arith.constant 0 : index
    %c0_0 = arith.constant 0 : index
    %c0_1 = arith.constant 0 : index
    %0 = vector.load %arg0[%c0, %c0_0, %c0_1] : memref<2x8x64xf32, #tpu.memory_space<vmem>>, vector<2x8x64xf32>
    "tpu.trace_start"() <{level = 10 : i32, message = "bqd,bkd->bqk"}> : () -> ()
    %cst = arith.constant dense<0.000000e+00> : vector<2x8x8xf32>
    %1 = tpu.matmul %0, %0, %cst {dimension_numbers = #tpu.dot_dimension_numbers<[2], [2], [1], [1], [0, 0, 0, 1, 1, 1], [0], [0]>} : vector<2x8x64xf32>, vector<2x8x64xf32>, vector<2x8x8xf32> -> vector<2x8x8xf32>
    "tpu.trace_stop"() : () -> ()
    %c0_2 = arith.constant 0 : index
    %c0_3 = arith.constant 0 : index
    %2 = vector.load %arg1[%c0_2, %c0_3] : memref<2x8xf32, #tpu.memory_space<vmem>>, vector<2x8xf32>
    %3 = vector.shape_cast %2 : vector<2x8xf32> to vector<2x1x8xf32>
    %4 = vector.broadcast %3 : vector<2x1x8xf32> to vector<2x8x8xf32>
    %5 = arith.addf %1, %4 : vector<2x8x8xf32>
    %cst_4 = arith.constant dense<0xFF800000> : vector<2x8xf32>
    %6 = vector.multi_reduction <maximumf>, %5, %cst_4 [2] : vector<2x8x8xf32> to vector<2x8xf32>
    %7 = vector.shape_cast %6 : vector<2x8xf32> to vector<2x8x1xf32>
    %8 = vector.broadcast %7 : vector<2x8x1xf32> to vector<2x8x8xf32>
    %9 = arith.subf %5, %8 : vector<2x8x8xf32>
    %10 = math.exp %9 : vector<2x8x8xf32>
    %cst_5 = arith.constant dense<0.000000e+00> : vector<2x8xf32>
    %11 = vector.multi_reduction <add>, %10, %cst_5 [2] : vector<2x8x8xf32> to vector<2x8xf32>
    %12 = vector.shape_cast %11 : vector<2x8xf32> to vector<2x8x1xf32>
    %13 = tpu.reciprocal %12 {approx = true} : vector<2x8x1xf32> -> vector<2x8x1xf32>
    %14 = vector.broadcast %13 : vector<2x8x1xf32> to vector<2x8x8xf32>
    %15 = arith.mulf %10, %14 : vector<2x8x8xf32>
    "tpu.trace_start"() <{level = 10 : i32, message = "bqk,bkd->bqd"}> : () -> ()
    %cst_6 = arith.constant dense<0.000000e+00> : vector<2x8x64xf32>
    %16 = tpu.matmul %15, %0, %cst_6 {dimension_numbers = #tpu.dot_dimension_numbers<[2], [1], [1], [2], [0, 0, 0, 1, 1, 2], [0], [0]>} : vector<2x8x8xf32>, vector<2x8x64xf32>, vector<2x8x64xf32> -> vector<2x8x64xf32>
    "tpu.trace_stop"() : () -> ()
    %17 = vector.shape_cast %0 : vector<2x8x64xf32> to vector<16x64xf32>
    %18 = vector.shape_cast %16 : vector<2x8x64xf32> to vector<16x64xf32>
    %19 = arith.mulf %17, %18 : vector<16x64xf32>
    %20 = arith.subf %17, %18 : vector<16x64xf32>
    %21 = tpu.concatenate %17, %18, %19, %20 in 1 : vector<16x64xf32>, vector<16x64xf32>, vector<16x64xf32>, vector<16x64xf32> -> vector<16x256xf32>
    %c0_7 = arith.constant 0 : index
    %c0_8 = arith.constant 0 : index
    %22 = vector.load %arg3[%c0_7, %c0_8] : memref<256x128xf32, #tpu.memory_space<vmem>>, vector<256x128xf32>
    %cst_9 = arith.constant dense<0.000000e+00> : vector<16x128xf32>
    %23 = tpu.matmul %21, %22, %cst_9 {dimension_numbers = #tpu.dot_dimension_numbers<[1], [0], [0], [1], [0, 0, 1, 1], [], []>} : vector<16x256xf32>, vector<256x128xf32>, vector<16x128xf32> -> vector<16x128xf32>
    %c0_10 = arith.constant 0 : index
    %c0_11 = arith.constant 0 : index
    %24 = vector.load %arg4[%c0_10, %c0_11] : memref<1x128xf32, #tpu.memory_space<vmem>>, vector<1x128xf32>
    %25 = vector.broadcast %24 : vector<1x128xf32> to vector<16x128xf32>
    %26 = arith.addf %23, %25 : vector<16x128xf32>
    %27 = vector.extract_strided_slice %26 {offsets = [0, 0], sizes = [16, 64], strides = [1, 1]} : vector<16x128xf32> to vector<16x64xf32>
    %28 = math.tanh %27 : vector<16x64xf32>
    %29 = vector.extract_strided_slice %26 {offsets = [0, 64], sizes = [16, 64], strides = [1, 1]} : vector<16x128xf32> to vector<16x64xf32>
    %30 = arith.negf %29 : vector<16x64xf32>
    %31 = math.exp %30 : vector<16x64xf32>
    %cst_12 = arith.constant 1.000000e+00 : f32
    %32 = vector.broadcast %cst_12 : f32 to vector<16x64xf32>
    %33 = arith.addf %32, %31 : vector<16x64xf32>
    %34 = arith.divf %32, %33 : vector<16x64xf32>
    %35 = arith.mulf %34, %28 : vector<16x64xf32>
    %cst_13 = arith.constant 1.000000e+00 : f32
    %36 = vector.broadcast %cst_13 : f32 to vector<16x64xf32>
    %37 = arith.subf %36, %34 : vector<16x64xf32>
    %38 = arith.mulf %37, %17 : vector<16x64xf32>
    %39 = arith.addf %35, %38 : vector<16x64xf32>
    %c0_14 = arith.constant 0 : index
    %c0_15 = arith.constant 0 : index
    %40 = vector.load %arg2[%c0_14, %c0_15] : memref<2x8xf32, #tpu.memory_space<vmem>>, vector<2x8xf32>
    %cst_16 = arith.constant dense<0.000000e+00> : vector<2xf32>
    %41 = vector.multi_reduction <add>, %40, %cst_16 [1] : vector<2x8xf32> to vector<2xf32>
    %42 = vector.shape_cast %41 : vector<2xf32> to vector<2x1xf32>
    %cst_17 = arith.constant 1.000000e+00 : f32
    %43 = vector.broadcast %cst_17 : f32 to vector<2x1xf32>
    %44 = arith.maximumf %42, %43 : vector<2x1xf32>
    %45 = vector.shape_cast %39 : vector<16x64xf32> to vector<2x8x64xf32>
    %46 = vector.shape_cast %40 : vector<2x8xf32> to vector<2x8x1xf32>
    %47 = vector.broadcast %46 : vector<2x8x1xf32> to vector<2x8x64xf32>
    %48 = arith.mulf %45, %47 : vector<2x8x64xf32>
    %cst_18 = arith.constant dense<0.000000e+00> : vector<2x64xf32>
    %49 = vector.multi_reduction <add>, %48, %cst_18 [1] : vector<2x8x64xf32> to vector<2x64xf32>
    %50 = vector.broadcast %44 : vector<2x1xf32> to vector<2x64xf32>
    %51 = arith.divf %49, %50 : vector<2x64xf32>
    %c0_19 = arith.constant 0 : index
    %c0_20 = arith.constant 0 : index
    %52 = vector.load %arg5[%c0_19, %c0_20] : memref<64x96xf32, #tpu.memory_space<vmem>>, vector<64x96xf32>
    %cst_21 = arith.constant dense<0.000000e+00> : vector<2x96xf32>
    %53 = tpu.matmul %51, %52, %cst_21 {dimension_numbers = #tpu.dot_dimension_numbers<[1], [0], [0], [1], [0, 0, 1, 1], [], []>} : vector<2x64xf32>, vector<64x96xf32>, vector<2x96xf32> -> vector<2x96xf32>
    %c0_22 = arith.constant 0 : index
    %c0_23 = arith.constant 0 : index
    %54 = vector.load %arg6[%c0_22, %c0_23] : memref<1x96xf32, #tpu.memory_space<vmem>>, vector<1x96xf32>
    %55 = vector.broadcast %54 : vector<1x96xf32> to vector<2x96xf32>
    %56 = arith.addf %53, %55 : vector<2x96xf32>
    %cst_24 = arith.constant 0.000000e+00 : f32
    %57 = vector.broadcast %cst_24 : f32 to vector<2x96xf32>
    %58 = arith.maximumf %56, %57 : vector<2x96xf32>
    %c0_25 = arith.constant 0 : index
    %c0_26 = arith.constant 0 : index
    %59 = vector.load %arg7[%c0_25, %c0_26] : memref<96x12xf32, #tpu.memory_space<vmem>>, vector<96x12xf32>
    %cst_27 = arith.constant dense<0.000000e+00> : vector<2x12xf32>
    %60 = tpu.matmul %58, %59, %cst_27 {dimension_numbers = #tpu.dot_dimension_numbers<[1], [0], [0], [1], [0, 0, 1, 1], [], []>} : vector<2x96xf32>, vector<96x12xf32>, vector<2x12xf32> -> vector<2x12xf32>
    %c0_28 = arith.constant 0 : index
    %c0_29 = arith.constant 0 : index
    %61 = vector.load %arg8[%c0_28, %c0_29] : memref<1x12xf32, #tpu.memory_space<vmem>>, vector<1x12xf32>
    %62 = vector.broadcast %61 : vector<1x12xf32> to vector<2x12xf32>
    %63 = arith.addf %60, %62 : vector<2x12xf32>
    %c0_30 = arith.constant 0 : index
    %c0_31 = arith.constant 0 : index
    %64 = vector.load %arg9[%c0_30, %c0_31] : memref<2x12xf32, #tpu.memory_space<vmem>>, vector<2x12xf32>
    tpu.vector_store %arg9[%c0_30, %c0_31], %63 {strides = array<i32>} : memref<2x12xf32, #tpu.memory_space<vmem>>, vector<2x12xf32>,
    return
  }
}

</mosaic_0001>

<llo_original>
// kernel: model_forward.2
$region0: #{model_forward.2}
  #allocation0 [shape = 'u32[]', space=smem, size = 0x4, offset = 0x4, fixed_abs, tag = 'smem constant byte address 0x4 - core index']
  #allocation1 [shape = 'u32[144,128]{1,0:T(1,128)}', space=vmem, size = 0x12000, scoped, tag = 'internal scratch']
  #allocation2 [shape = 'f32[2,64]{1,0:T(2,128)}', space=vmem, size = 0x400, scoped, tag = 'scratch operand']
  #allocation3 [shape = 'f32[2,64]{1,0:T(2,128)}', space=vmem, size = 0x400, scoped, tag = 'scratch operand']
  %s0 = inlined_call_operand.vmem [shape: f32[8,2,256], index: 0, kind: input, shape index: {}]
  %s1 = inlined_call_operand.vmem [shape: f32[64,256], index: 1, kind: input, shape index: {}]
  %s2 = inlined_call_operand.vmem [shape: f32[8,2,64], index: 2, kind: output, shape index: {}]
  %s3 = sld [smem:[#allocation0]]
  $region45: #{model_forward.2} parent=0
    _
  %s5 = ssub.s32 1, %s3
  %s6 = scalar_select 0, %s5, %s3
  loop: start=0, step=1, limit=10
  $region2: #{model_forward.2} parent=0 // loop_pre_header
    _
  $region3: #{model_forward.2} parent=0 // loop_header
    %s8 = sphi 0, %s12
    %p9 = scmp.ge.s32.totalorder %s8, 10
    %s18 = sphi 0, %s20
    %s21 = sphi 0, %s18
    %s22 = sphi 0, %s21
    %s38 = sphi 0, %s22
    %s42 = sphi 0, %s42
    %s44 = sphi 0, %s42
    %s45 = sphi 0, %s44
    %s59 = sphi 0, %s45
    %s65 = sphi 0, %s67
    %s68 = sphi 0, %s65
    %s69 = sphi 0, %s68
    %s85 = sphi 0, %s69
  $region4: #{model_forward.2} parent=0 // loop_header_branch
    %11 = sbr.rel (%p9) target = $region8
  $region5: #{model_forward.2} parent=0 // loop_body
    %s13 = ssub.s32 %s8, 1
    %s14 = ssub.s32 %s8, 2
    %s15 = sadd.s32 %s8, 1
    %s16 = ssub.s32 %s8, %s15
    %p17 = scmp.eq.s32.totalorder %s16, 0
    %s19 = sadd.s32 %s18, 1
    %s20 = scalar_select %p17, %s18, %s19
    %p23 = pneg %p17
    %p24 = scmp.eq.s32.totalorder %s8, 7
    %p25 = por %p23, %p24
    %p26 = scmp.ne.s32.totalorder %s18, %s21
    %p27 = scmp.eq.s32.totalorder %s8, 0
    %p28 = por %p26, %p27
    %p29 = scmp.ne.s32.totalorder %s18, %s21
    %p30 = scmp.eq.s32.totalorder %s13, 7
    %p31 = por %p29, %p30
    %p32 = scmp.ne.s32.totalorder %s21, %s22
    %p33 = scmp.eq.s32.totalorder %s13, 0
    %p34 = por %p32, %p33
    %p35 = scmp.ne.s32.totalorder %s21, %s22
    %p36 = scmp.eq.s32.totalorder %s14, 7
    %p37 = por %p35, %p36
    %p39 = scmp.ne.s32.totalorder %s22, %s38
    %p40 = scmp.eq.s32.totalorder %s14, 0
    %p41 = por %p39, %p40
    %s43 = sadd.s32 %s42, 1
    %p46 = scmp.eq.s32.totalorder %s8, 7
    %p47 = scmp.ne.s32.totalorder %s42, %s44
    %p48 = scmp.eq.s32.totalorder %s8, 0
    %p49 = por %p47, %p48
    %p50 = scmp.ne.s32.totalorder %s42, %s44
    %p51 = scmp.eq.s32.totalorder %s13, 7
    %p52 = por %p50, %p51
    %p53 = scmp.ne.s32.totalorder %s44, %s45
    %p54 = scmp.eq.s32.totalorder %s13, 0
    %p55 = por %p53, %p54
    %p56 = scmp.ne.s32.totalorder %s44, %s45
    %p57 = scmp.eq.s32.totalorder %s14, 7
    %p58 = por %p56, %p57
    %p60 = scmp.ne.s32.totalorder %s45, %s59
    %p61 = scmp.eq.s32.totalorder %s14, 0
    %p62 = por %p60, %p61
    %s63 = ssub.s32 %s8, %s15
    %p64 = scmp.eq.s32.totalorder %s63, 0
    %s66 = sadd.s32 %s65, 1
    %s67 = scalar_select %p64, %s65, %s66
    %p70 = pneg %p64
    %p71 = scmp.eq.s32.totalorder %s8, 7
    %p72 = por %p70, %p71
    %p73 = scmp.ne.s32.totalorder %s65, %s68
    %p74 = scmp.eq.s32.totalorder %s8, 0
    %p75 = por %p73, %p74
    %p76 = scmp.ne.s32.totalorder %s65, %s68
    %p77 = scmp.eq.s32.totalorder %s13, 7
    %p78 = por %p76, %p77
    %p79 = scmp.ne.s32.totalorder %s68, %s69
    %p80 = scmp.eq.s32.totalorder %s13, 0
    %p81 = por %p79, %p80
    %p82 = scmp.ne.s32.totalorder %s68, %s69
    %p83 = scmp.eq.s32.totalorder %s14, 7
    %p84 = por %p82, %p83
    %p86 = scmp.ne.s32.totalorder %s69, %s85
    %p87 = scmp.eq.s32.totalorder %s14, 0
    %p88 = por %p86, %p87
    %p89 = scmp.le.s32.totalorder 1, %s8
    %p90 = scmp.lt.s32.totalorder %s8, 9
    %p91 = pnand %p89, %p90
    %p92 = pneg %p91
    // Predicated region
    $region9: #{model_forward.2} parent=5 // pred_check
      _
    $region10: #{model_forward.2} parent=5 // pred_check_branch
      %94 = sbr.rel (%p91) target = $region12
    $region11: #{model_forward.2} parent=5 // pred_region
      %s95 = ssub.s32 %s8, 1
      // Predicated region
      $region13: #{model_forward.2} parent=11 // pred_check
        %p96 = pneg %p55
      $region14: #{model_forward.2} parent=11 // pred_check_branch
        %98 = sbr.rel (%p96) target = $region16
      $region15: #{model_forward.2} parent=11 // pred_region
        _
      $region16: #{model_forward.2} parent=11 // pred_fallthru
        _
    $region12: #{model_forward.2} parent=5 // pred_fallthru
      _
    %p99 = scmp.lt.s32.totalorder %s8, 8
    // Predicated region
    $region17: #{model_forward.2} parent=5 // pred_check
      %p100 = pneg %p99
    $region18: #{model_forward.2} parent=5 // pred_check_branch
      %102 = sbr.rel (%p100) target = $region20
    $region19: #{model_forward.2} parent=5 // pred_region
      // Predicated region
      $region21: #{model_forward.2} parent=19 // pred_check
        %p103 = pneg %p28
      $region22: #{model_forward.2} parent=19 // pred_check_branch
        %105 = sbr.rel (%p103) target = $region24
      $region23: #{model_forward.2} parent=19 // pred_region
        %p106 = scmp.lt.s32.totalorder %s8, 7
        %s107 = scalar_select %p106, %s8, 7
        %s108 = smul.addr %s107, 2
        %s109 = smul.addr %s108, 2
        %s110 = scalar_lea.vmem %s0, %s109
      $region24: #{model_forward.2} parent=19 // pred_fallthru
        _
    $region20: #{model_forward.2} parent=5 // pred_fallthru
      _
    %p111 = scmp.le.s32.totalorder 1, %s8
    %p112 = scmp.lt.s32.totalorder %s8, 9
    %p113 = pnand %p111, %p112
    %p114 = pneg %p113
    // Predicated region
    $region25: #{model_forward.2} parent=5 // pred_check
      _
    $region26: #{model_forward.2} parent=5 // pred_check_branch
      %116 = sbr.rel (%p113) target = $region28
    $region27: #{model_forward.2} parent=5 // pred_region
      %s117 = ssub.s32 %s8, 1
      %p118 = scmp.lt.s32.totalorder %s13, 7
      %s119 = scalar_select %p118, %s13, 7
      %s120 = smul.addr %s119, 2
      %s121 = smul.addr %s120, 2
      %s122 = scalar_lea.vmem %s0, %s121
      %p123 = pneg %p34
      %p124 = pneg %p31
      %p125 = pneg %p55
      %p126 = pneg %p52
      %p127 = pneg %p81
      %p128 = pneg %p78
      %p129 = scmp.lt.s32.totalorder %s13, 7
      %s130 = scalar_select %p129, %s13, 7
      %s131 = smul.addr %s130, 2
      %s132 = scalar_lea.vmem %s2, %s131
      %p133 = scmp.lt.s32.totalorder %s13, 7
      %s134 = scalar_select %p133, %s13, 7
      %s135 = smul.addr %s134, 2
      %s136 = smul.addr %s135, 2
      %s137 = scalar_lea.vmem %s0, %s136
      %p138 = scmp.lt.s32.totalorder %s13, 7
      %s139 = scalar_select %p138, %s13, 7
      %s140 = smul.addr %s139, 2
      %s141 = scalar_lea.vmem %s2, %s140
      %p142 = scmp.eq.s32.totalorder %s13, 0
      // Predicated region
      $region29: #{model_forward.2} parent=27 // pred_check
        %p143 = pneg %p142
      $region30: #{model_forward.2} parent=27 // pred_check_branch
        %145 = sbr.rel (%p143) target = $region32
      $region31: #{model_forward.2} parent=27 // pred_region
        %vm146 = vcmask 517120
        %147 = vst.msk [vmem:[#allocation2] sm:$0x3] %vm146, 0.0
        %148 = vst.msk [vmem:[#allocation3] sm:$0x3] %vm146, 0.0
      $region32: #{model_forward.2} parent=27 // pred_fallthru
        _
      %v149 = vld [vmem:[%s137] sm:$0xf]
      %v150 = vld [vmem:[#allocation2] sm:$0x3]
      %v151 = vld [vmem:[%s1] sm:$0xff]
      %v152 = vld [vmem:[%s1 + $0x8] sm:$0xff]
      %v153 = vld [vmem:[%s1 + $0x10] sm:$0xff]
      %v154 = vld [vmem:[%s1 + $0x18] sm:$0xff]
      %v155 = vld [vmem:[%s1 + $0x20] sm:$0xff]
      %v156 = vld [vmem:[%s1 + $0x28] sm:$0xff]
      %v157 = vld [vmem:[%s1 + $0x30] sm:$0xff]
      %v158 = vld [vmem:[%s1 + $0x38] sm:$0xff]
      %v159 = vld [vmem:[%s1 + $0x40] sm:$0xff]
      %v160 = vld [vmem:[%s1 + $0x48] sm:$0xff]
      %v161 = vld [vmem:[%s1 + $0x50] sm:$0xff]
      %v162 = vld [vmem:[%s1 + $0x58] sm:$0xff]
      %v163 = vld [vmem:[%s1 + $0x60] sm:$0xff]
      %v164 = vld [vmem:[%s1 + $0x68] sm:$0xff]
      %v165 = vld [vmem:[%s1 + $0x70] sm:$0xff]
      %v166 = vld [vmem:[%s1 + $0x78] sm:$0xff]
      %vm167 = vcmask 523264
      %v169 = vsel %vm167, %v150, 0
      %171 = vmatprep.subr.mxu0 0.0
      %172 = vmatpush1.msra.mxu0 0.0
      %173 = vmatprep.subr.mxu0 0.0
      %174 = vmatpush1.msra.mxu0 0.0
      %175 = vmatprep.subr.mxu0 0.0
      %176 = vmatpush1.msra.mxu0 0.0
      %177 = vmatprep.subr.mxu0 0.0
      %178 = vmatpush1.msra.mxu0 0.0
      %179 = vmatprep.subr.mxu0 0.0
      %180 = vmatpush1.msra.mxu0 0.0
      %181 = vmatprep.subr.mxu0 0.0
      %182 = vmatpush1.msra.mxu0 0.0
      %183 = vmatprep.subr.mxu0 0.0
      %184 = vmatpush1.msra.mxu0 0.0
      %185 = vmatprep.subr.mxu0 0.0
      %186 = vmatpush1.msra.mxu0 0.0
      %187 = vmatprep.subr.mxu0 %v166
      %188 = vmatpush1.msra.mxu0 %v165
      %189 = vmatprep.subr.mxu0 %v164
      %190 = vmatpush1.msra.mxu0 %v163
      %191 = vmatprep.subr.mxu0 %v162
      %192 = vmatpush1.msra.mxu0 %v161
      %193 = vmatprep.subr.mxu0 %v160
      %194 = vmatpush1.msra.mxu0 %v159
      %195 = vmatprep.subr.mxu0 %v158
      %196 = vmatpush1.msra.mxu0 %v157
      %197 = vmatprep.subr.mxu0 %v156
      %198 = vmatpush1.msra.mxu0 %v155
      %199 = vmatprep.subr.mxu0 %v154
      %200 = vmatpush1.msra.mxu0 %v153
      %201 = vmatprep.subr.mxu0 %v152
      %202 = vmatpush1.msra.mxu0 %v151
      %203 = vmatprep.subr.mxu0 0.0
      %204 = vmatpush2.msra.mxu0 0.0
      %205 = vmatprep.subr.mxu0 0.0
      %206 = vmatpush2.msra.mxu0 0.0
      %207 = vmatprep.subr.mxu0 0.0
      %208 = vmatpush2.msra.mxu0 0.0
      %209 = vmatprep.subr.mxu0 0.0
      %210 = vmatpush2.msra.mxu0 0.0
      %211 = vmatprep.subr.mxu0 0.0
      %212 = vmatpush2.msra.mxu0 0.0
      %213 = vmatprep.subr.mxu0 0.0
      %214 = vmatpush2.msra.mxu0 0.0
      %215 = vmatprep.subr.mxu0 0.0
      %216 = vmatpush2.msra.mxu0 0.0
      %217 = vmatprep.subr.mxu0 0.0
      %218 = vmatpush2.msra.mxu0 0.0
      %219 = vmatprep.subr.mxu0 0.0
      %220 = vmatpush2.msra.mxu0 0.0
      %221 = vmatprep.subr.mxu0 0.0
      %222 = vmatpush2.msra.mxu0 0.0
      %223 = vmatprep.subr.mxu0 0.0
      %224 = vmatpush2.msra.mxu0 0.0
      %225 = vmatprep.subr.mxu0 0.0
      %226 = vmatpush2.msra.mxu0 0.0
      %227 = vmatprep.subr.mxu0 0.0
      %228 = vmatpush2.msra.mxu0 0.0
      %229 = vmatprep.subr.mxu0 0.0
      %230 = vmatpush2.msra.mxu0 0.0
      %231 = vmatprep.subr.mxu0 0.0
      %232 = vmatpush2.msra.mxu0 0.0
      %233 = vmatprep.subr.mxu0 0.0
      %234 = vmatpush2.msra.mxu0 0.0
      %235 = vmatprep.mubr.f32.mxu0 0.0
      %236 = vmatmul.mubr.f32.gmra.mxu0 %v169
      %v237 = vpop.f32.mrf.mxu0
      %v238 = vadd.f32 0.0, %v237
      %v239 = vpop.f32.mrf.mxu0
      %v240 = vadd.f32 0.0, %v239
      %241 = vdwg.mxu0
      %v244 = vcombine.low %v238, %v240
      %v246 = vunpack.c.l.s4 1983009808
      %v247 = vunpack.c.0.s8 %v246
      %v248 = vlaneseq
      %v249 = vshrl.u32 %v248, 7
      %v250 = vsub.s32 %v247, %v249
      %v251 = vrot.slane %v244, %v250
      %v253 = vadd.f32 %v149, %v251
      %v254 = vxor.u32 %v253, 2147483648
      %v255 = vmul.f32 %v254, 1.442695
      %v256 = vpow.pop %v255
      %v257 = vadd.f32 %v256, 1.0
      %v258 = vrcp.pop %v257
      %v259 = vmul.f32 1.0, %v258
      %v261 = vrot.slane %v253, 2
      %v263 = vtanh.pop %v261
      %264 = vrot.lane.b32.xlu0 %v253, 64
      %v265 = vpop.permute.xlu0 %264
      %v266 = vrot.slane %v265, 2
      %v268 = vxor.u32 %v266, 2147483648
      %v269 = vmul.f32 %v268, 1.442695
      %v270 = vpow.pop %v269
      %v271 = vadd.f32 %v270, 1.0
      %v272 = vrcp.pop %v271
      %v273 = vmul.f32 1.0, %v272
      %v274 = vld [vmem:[#allocation3] sm:$0x3]
      %v277 = vunpack.c.l.s4 1983009808
      %v278 = vunpack.c.0.s8 %v277
      %v279 = vlaneseq
      %v280 = vshrl.u32 %v279, 7
      %v281 = vsub.s32 %v278, %v280
      %v282 = vrot.slane %v274, %v281
      %283 = vrot.lane.b32.xlu0 %v282, 64
      %v284 = vpop.permute.xlu0 %283
      %v286 = vmul.f32 %v259, %v284
      %v287 = vmul.f32 %v259, %v263
      %289 = vrot.lane.b32.xlu0 %v287, 64
      %v290 = vpop.permute.xlu0 %289
      %v292 = vadd.f32 %v286, %v290
      %v293 = vtanh.pop %v292
      %295 = vrot.lane.b32.xlu0 %v293, 64
      %v296 = vpop.permute.xlu0 %295
      %v298 = vmul.f32 %v273, %v296
      %v301 = vunpack.c.l.s4 1983009808
      %v302 = vunpack.c.0.s8 %v301
      %v303 = vlaneseq
      %v304 = vshrl.u32 %v303, 7
      %v305 = vsub.s32 %v302, %v304
      %v306 = vrot.slane %v292, %v305
      %307 = vrot.lane.b32.xlu0 %v306, 64
      %v308 = vpop.permute.xlu0 %307
      %vm310 = vcmask 517120
      %311 = vst.msk [vmem:[#allocation3] sm:$0x3] %vm310, %v308
      %312 = vst.msk [vmem:[#allocation2] sm:$0x3] %vm310, %v298
      %313 = vst.msk [vmem:[%s141] sm:$0x3] %vm310, %v298
      %p314 = scmp.lt.s32.totalorder %s13, 7
      %s315 = scalar_select %p314, %s13, 7
      %s316 = smul.addr %s315, 2
      %s317 = scalar_lea.vmem %s2, %s316
      // Predicated region
      $region33: #{model_forward.2} parent=27 // pred_check
        %p318 = pneg %p78
      $region34: #{model_forward.2} parent=27 // pred_check_branch
        %320 = sbr.rel (%p318) target = $region36
      $region35: #{model_forward.2} parent=27 // pred_region
        _
      $region36: #{model_forward.2} parent=27 // pred_fallthru
        _
    $region28: #{model_forward.2} parent=5 // pred_fallthru
      _
    %p321 = scmp.le.s32.totalorder 2, %s8
    // Predicated region
    $region37: #{model_forward.2} parent=5 // pred_check
      %p322 = pneg %p321
    $region38: #{model_forward.2} parent=5 // pred_check_branch
      %324 = sbr.rel (%p322) target = $region40
    $region39: #{model_forward.2} parent=5 // pred_region
      %s325 = ssub.s32 %s8, 2
      // Predicated region
      $region41: #{model_forward.2} parent=39 // pred_check
        %p326 = pneg %p84
      $region42: #{model_forward.2} parent=39 // pred_check_branch
        %328 = sbr.rel (%p326) target = $region44
      $region43: #{model_forward.2} parent=39 // pred_region
        %p329 = scmp.lt.s32.totalorder %s14, 7
        %s330 = scalar_select %p329, %s14, 7
        %s331 = smul.addr %s330, 2
        %s332 = scalar_lea.vmem %s2, %s331
      $region44: #{model_forward.2} parent=39 // pred_fallthru
        _
    $region40: #{model_forward.2} parent=5 // pred_fallthru
      _
  $region6: #{model_forward.2} parent=0 // loop_footer
    %s12 = sadd.s32 1, %s8
  $region7: #{model_forward.2} parent=0 // loop_footer_branch
    %7 = sbr.rel target = $region3
  $region8: #{model_forward.2} parent=0 // loop_exit
    _

// kernel: model_forward.3
$region0: #{model_forward.3}
  #allocation0 [shape = 'u32[]', space=smem, size = 0x4, offset = 0x4, fixed_abs, tag = 'smem constant byte address 0x4 - core index']
  #allocation1 [shape = 'u32[144,128]{1,0:T(1,128)}', space=vmem, size = 0x12000, scoped, tag = 'internal scratch']
  %s0 = inlined_call_operand.vmem [shape: f32[2,8,64], index: 0, kind: input, shape index: {}]
  %s1 = inlined_call_operand.vmem [shape: f32[2,8], index: 1, kind: input, shape index: {}]
  %s2 = inlined_call_operand.vmem [shape: f32[2,8], index: 2, kind: input, shape index: {}]
  %s3 = inlined_call_operand.vmem [shape: f32[256,128], index: 3, kind: input, shape index: {}]
  %s4 = inlined_call_operand.vmem [shape: f32[1,128], index: 4, kind: input, shape index: {}]
  %s5 = inlined_call_operand.vmem [shape: f32[64,96], index: 5, kind: input, shape index: {}]
  %s6 = inlined_call_operand.vmem [shape: f32[1,96], index: 6, kind: input, shape index: {}]
  %s7 = inlined_call_operand.vmem [shape: f32[96,12], index: 7, kind: input, shape index: {}]
  %s8 = inlined_call_operand.vmem [shape: f32[1,12], index: 8, kind: input, shape index: {}]
  %s9 = inlined_call_operand.vmem [shape: f32[2,12], index: 9, kind: output, shape index: {}]
  %s10 = sld [smem:[#allocation0]]
  $region46: #{model_forward.3} parent=0
    _
  %s12 = ssub.s32 1, %s10
  %s13 = scalar_select 0, %s12, %s10
  // Predicated region
  $region2: #{model_forward.3} parent=0 // pred_check
    _
  $region3: #{model_forward.3} parent=0 // pred_check_branch
    %15 = sbr.rel (0) target = $region5
  $region4: #{model_forward.3} parent=0 // pred_region
    _
  $region5: #{model_forward.3} parent=0 // pred_fallthru
    _
  // Predicated region
  $region6: #{model_forward.3} parent=0 // pred_check
    _
  $region7: #{model_forward.3} parent=0 // pred_check_branch
    %17 = sbr.rel (0) target = $region9
  $region8: #{model_forward.3} parent=0 // pred_region
    _
  $region9: #{model_forward.3} parent=0 // pred_fallthru
    _
  // Predicated region
  $region10: #{model_forward.3} parent=0 // pred_check
    _
  $region11: #{model_forward.3} parent=0 // pred_check_branch
    %19 = sbr.rel (0) target = $region13
  $region12: #{model_forward.3} parent=0 // pred_region
    _
  $region13: #{model_forward.3} parent=0 // pred_fallthru
    _
  // Predicated region
  $region14: #{model_forward.3} parent=0 // pred_check
    _
  $region15: #{model_forward.3} parent=0 // pred_check_branch
    %21 = sbr.rel (0) target = $region17
  $region16: #{model_forward.3} parent=0 // pred_region
    _
  $region17: #{model_forward.3} parent=0 // pred_fallthru
    _
  // Predicated region
  $region18: #{model_forward.3} parent=0 // pred_check
    _
  $region19: #{model_forward.3} parent=0 // pred_check_branch
    %23 = sbr.rel (0) target = $region21
  $region20: #{model_forward.3} parent=0 // pred_region
    _
  $region21: #{model_forward.3} parent=0 // pred_fallthru
    _
  // Predicated region
  $region22: #{model_forward.3} parent=0 // pred_check
    _
  $region23: #{model_forward.3} parent=0 // pred_check_branch
    %25 = sbr.rel (0) target = $region25
  $region24: #{model_forward.3} parent=0 // pred_region
    _
  $region25: #{model_forward.3} parent=0 // pred_fallthru
    _
  // Predicated region
  $region26: #{model_forward.3} parent=0 // pred_check
    _
  $region27: #{model_forward.3} parent=0 // pred_check_branch
    %27 = sbr.rel (0) target = $region29
  $region28: #{model_forward.3} parent=0 // pred_region
    _
  $region29: #{model_forward.3} parent=0 // pred_fallthru
    _
  // Predicated region
  $region30: #{model_forward.3} parent=0 // pred_check
    _
  $region31: #{model_forward.3} parent=0 // pred_check_branch
    %29 = sbr.rel (0) target = $region33
  $region32: #{model_forward.3} parent=0 // pred_region
    _
  $region33: #{model_forward.3} parent=0 // pred_fallthru
    _
  // Predicated region
  $region34: #{model_forward.3} parent=0 // pred_check
    _
  $region35: #{model_forward.3} parent=0 // pred_check_branch
    %31 = sbr.rel (0) target = $region37
  $region36: #{model_forward.3} parent=0 // pred_region
    _
  $region37: #{model_forward.3} parent=0 // pred_fallthru
    _
  %v32 = vld [vmem:[%s0] sm:$0xff]
  %v33 = vld [vmem:[%s0 + $0x8] sm:$0xff]
  %v34 = vld [vmem:[%s1] sm:$0x3]
  %v37 = vunpack.c.l.s4 1966171168
  %v38 = vunpack.c.0.s8 %v37
  %v39 = vlaneseq
  %v40 = vshrl.u32 %v39, 7
  %v41 = vsub.s32 %v38, %v40
  %v42 = vrot.slane %v34, %v41
  %v43 = vcombine.high %v42, %v42
  %v45 = vunpack.c.l.s4 1966171168
  %v46 = vunpack.c.0.s8 %v45
  %v47 = vlaneseq
  %v48 = vshrl.u32 %v47, 7
  %v49 = vsub.s32 %v46, %v48
  %v50 = vrot.slane %v42, %v49
  %v52 = vunpack.c.l.s4 1966171168
  %v53 = vunpack.c.0.s8 %v52
  %v54 = vlaneseq
  %v55 = vshrl.u32 %v54, 7
  %v56 = vsub.s32 %v53, %v55
  %v57 = vrot.slane %v43, %v56
  %v58 = vlaneseq
  %v59 = vshrl.u32 %v58, 7
  %v60 = vsub.s32 0, %v59
  %v61 = vrot.slane %v50, %v60
  %v62 = vlaneseq
  %v63 = vshrl.u32 %v62, 7
  %v64 = vsub.s32 0, %v63
  %v65 = vrot.slane %v57, %v64
  %vm68 = vcmask 523264
  %v70 = vsel %vm68, %v32, 0
  %72 = vmatprep.subr.mxu0 0.0
  %73 = vmatpush1.xpose.msra.mxu0 0.0
  %74 = vmatprep.subr.mxu0 0.0
  %75 = vmatpush1.xpose.msra.mxu0 0.0
  %76 = vmatprep.subr.mxu0 0.0
  %77 = vmatpush1.xpose.msra.mxu0 0.0
  %78 = vmatprep.subr.mxu0 0.0
  %79 = vmatpush1.xpose.msra.mxu0 0.0
  %80 = vmatprep.subr.mxu0 0.0
  %81 = vmatpush1.xpose.msra.mxu0 0.0
  %82 = vmatprep.subr.mxu0 0.0
  %83 = vmatpush1.xpose.msra.mxu0 0.0
  %84 = vmatprep.subr.mxu0 0.0
  %85 = vmatpush1.xpose.msra.mxu0 0.0
  %86 = vmatprep.subr.mxu0 0.0
  %87 = vmatpush1.xpose.msra.mxu0 0.0
  %88 = vmatprep.subr.mxu0 0.0
  %89 = vmatpush1.xpose.msra.mxu0 0.0
  %90 = vmatprep.subr.mxu0 0.0
  %91 = vmatpush1.xpose.msra.mxu0 0.0
  %92 = vmatprep.subr.mxu0 0.0
  %93 = vmatpush1.xpose.msra.mxu0 0.0
  %94 = vmatprep.subr.mxu0 0.0
  %95 = vmatpush1.xpose.msra.mxu0 0.0
  %96 = vmatprep.subr.mxu0 0.0
  %97 = vmatpush1.xpose.msra.mxu0 0.0
  %98 = vmatprep.subr.mxu0 0.0
  %99 = vmatpush1.xpose.msra.mxu0 0.0
  %100 = vmatprep.subr.mxu0 0.0
  %101 = vmatpush1.xpose.msra.mxu0 0.0
  %102 = vmatprep.subr.mxu0 0.0
  %103 = vmatpush1.xpose.msra.mxu0 %v70
  %104 = vmatprep.subr.mxu0 0.0
  %105 = vmatpush2.xpose.msra.mxu0 0.0
  %106 = vmatprep.subr.mxu0 0.0
  %107 = vmatpush2.xpose.msra.mxu0 0.0
  %108 = vmatprep.subr.mxu0 0.0
  %109 = vmatpush2.xpose.msra.mxu0 0.0
  %110 = vmatprep.subr.mxu0 0.0
  %111 = vmatpush2.xpose.msra.mxu0 0.0
  %112 = vmatprep.subr.mxu0 0.0
  %113 = vmatpush2.xpose.msra.mxu0 0.0
  %114 = vmatprep.subr.mxu0 0.0
  %115 = vmatpush2.xpose.msra.mxu0 0.0
  %116 = vmatprep.subr.mxu0 0.0
  %117 = vmatpush2.xpose.msra.mxu0 0.0
  %118 = vmatprep.subr.mxu0 0.0
  %119 = vmatpush2.xpose.msra.mxu0 0.0
  %120 = vmatprep.subr.mxu0 0.0
  %121 = vmatpush2.xpose.msra.mxu0 0.0
  %122 = vmatprep.subr.mxu0 0.0
  %123 = vmatpush2.xpose.msra.mxu0 0.0
  %124 = vmatprep.subr.mxu0 0.0
  %125 = vmatpush2.xpose.msra.mxu0 0.0
  %126 = vmatprep.subr.mxu0 0.0
  %127 = vmatpush2.xpose.msra.mxu0 0.0
  %128 = vmatprep.subr.mxu0 0.0
  %129 = vmatpush2.xpose.msra.mxu0 0.0
  %130 = vmatprep.subr.mxu0 0.0
  %131 = vmatpush2.xpose.msra.mxu0 0.0
  %132 = vmatprep.subr.mxu0 0.0
  %133 = vmatpush2.xpose.msra.mxu0 0.0
  %134 = vmatprep.subr.mxu0 0.0
  %135 = vmatpush2.xpose.msra.mxu0 0.0
  %136 = vmatprep.mubr.f32.mxu0 0.0
  %137 = vmatmul.mubr.f32.gmra.mxu0 %v70
  %v138 = vpop.f32.mrf.mxu0
  %v139 = vadd.f32 %v61, %v138
  %v140 = vpop.f32.mrf.mxu0
  %141 = vdwg.mxu0
  %v143 = vsel %vm68, %v33, 0
  %145 = vmatprep.subr.mxu0 0.0
  %146 = vmatpush1.xpose.msra.mxu0 0.0
  %147 = vmatprep.subr.mxu0 0.0
  %148 = vmatpush1.xpose.msra.mxu0 0.0
  %149 = vmatprep.subr.mxu0 0.0
  %150 = vmatpush1.xpose.msra.mxu0 0.0
  %151 = vmatprep.subr.mxu0 0.0
  %152 = vmatpush1.xpose.msra.mxu0 0.0
  %153 = vmatprep.subr.mxu0 0.0
  %154 = vmatpush1.xpose.msra.mxu0 0.0
  %155 = vmatprep.subr.mxu0 0.0
  %156 = vmatpush1.xpose.msra.mxu0 0.0
  %157 = vmatprep.subr.mxu0 0.0
  %158 = vmatpush1.xpose.msra.mxu0 0.0
  %159 = vmatprep.subr.mxu0 0.0
  %160 = vmatpush1.xpose.msra.mxu0 0.0
  %161 = vmatprep.subr.mxu0 0.0
  %162 = vmatpush1.xpose.msra.mxu0 0.0
  %163 = vmatprep.subr.mxu0 0.0
  %164 = vmatpush1.xpose.msra.mxu0 0.0
  %165 = vmatprep.subr.mxu0 0.0
  %166 = vmatpush1.xpose.msra.mxu0 0.0
  %167 = vmatprep.subr.mxu0 0.0
  %168 = vmatpush1.xpose.msra.mxu0 0.0
  %169 = vmatprep.subr.mxu0 0.0
  %170 = vmatpush1.xpose.msra.mxu0 0.0
  %171 = vmatprep.subr.mxu0 0.0
  %172 = vmatpush1.xpose.msra.mxu0 0.0
  %173 = vmatprep.subr.mxu0 0.0
  %174 = vmatpush1.xpose.msra.mxu0 0.0
  %175 = vmatprep.subr.mxu0 0.0
  %176 = vmatpush1.xpose.msra.mxu0 %v143
  %177 = vmatprep.subr.mxu0 0.0
  %178 = vmatpush2.xpose.msra.mxu0 0.0
  %179 = vmatprep.subr.mxu0 0.0
  %180 = vmatpush2.xpose.msra.mxu0 0.0
  %181 = vmatprep.subr.mxu0 0.0
  %182 = vmatpush2.xpose.msra.mxu0 0.0
  %183 = vmatprep.subr.mxu0 0.0
  %184 = vmatpush2.xpose.msra.mxu0 0.0
  %185 = vmatprep.subr.mxu0 0.0
  %186 = vmatpush2.xpose.msra.mxu0 0.0
  %187 = vmatprep.subr.mxu0 0.0
  %188 = vmatpush2.xpose.msra.mxu0 0.0
  %189 = vmatprep.subr.mxu0 0.0
  %190 = vmatpush2.xpose.msra.mxu0 0.0
  %191 = vmatprep.subr.mxu0 0.0
  %192 = vmatpush2.xpose.msra.mxu0 0.0
  %193 = vmatprep.subr.mxu0 0.0
  %194 = vmatpush2.xpose.msra.mxu0 0.0
  %195 = vmatprep.subr.mxu0 0.0
  %196 = vmatpush2.xpose.msra.mxu0 0.0
  %197 = vmatprep.subr.mxu0 0.0
  %198 = vmatpush2.xpose.msra.mxu0 0.0
  %199 = vmatprep.subr.mxu0 0.0
  %200 = vmatpush2.xpose.msra.mxu0 0.0
  %201 = vmatprep.subr.mxu0 0.0
  %202 = vmatpush2.xpose.msra.mxu0 0.0
  %203 = vmatprep.subr.mxu0 0.0
  %204 = vmatpush2.xpose.msra.mxu0 0.0
  %205 = vmatprep.subr.mxu0 0.0
  %206 = vmatpush2.xpose.msra.mxu0 0.0
  %207 = vmatprep.subr.mxu0 0.0
  %208 = vmatpush2.xpose.msra.mxu0 0.0
  %209 = vmatprep.mubr.f32.mxu0 0.0
  %210 = vmatmul.mubr.f32.gmra.mxu0 %v143
  %v211 = vpop.f32.mrf.mxu0
  %v212 = vadd.f32 %v65, %v211
  %v213 = vpop.f32.mrf.mxu0
  %214 = vdwg.mxu0
  %vm215 = vcmask 64512
  %v216 = vsel %vm215, %v139, -inf
  %217 = vmax.xlane.f32.xlu0 %v216
  %v218 = vpop.xlane.xlu0 %217
  %v219 = vsel %vm215, %v212, -inf
  %220 = vmax.xlane.f32.xlu0 %v219
  %v221 = vpop.xlane.xlu0 %220
  %v222 = vsub.f32 %v139, %v218
  %v223 = vsub.f32 %v212, %v221
  %v224 = vmul.f32 %v222, 1.442695
  %v225 = vpow.pop %v224
  %v226 = vmul.f32 %v223, 1.442695
  %v227 = vpow.pop %v226
  %v228 = vsel %vm215, %v225, 0.0
  %229 = vadd.xlane.f32.xlu0 %v228
  %v230 = vpop.xlane.xlu0 %229
  %v231 = vsel %vm215, %v227, 0.0
  %232 = vadd.xlane.f32.xlu0 %v231
  %v233 = vpop.xlane.xlu0 %232
  %v234 = vrcp.pop %v230
  %v235 = vrcp.pop %v233
  %v236 = vmul.f32 %v225, %v234
  %v237 = vmul.f32 %v227, %v235
  %v239 = vsel %vm215, %v236, 0
  %241 = vmatprep.subr.mxu0 0.0
  %242 = vmatpush1.msra.mxu0 0.0
  %243 = vmatprep.subr.mxu0 0.0
  %244 = vmatpush1.msra.mxu0 0.0
  %245 = vmatprep.subr.mxu0 0.0
  %246 = vmatpush1.msra.mxu0 0.0
  %247 = vmatprep.subr.mxu0 0.0
  %248 = vmatpush1.msra.mxu0 0.0
  %249 = vmatprep.subr.mxu0 0.0
  %250 = vmatpush1.msra.mxu0 0.0
  %251 = vmatprep.subr.mxu0 0.0
  %252 = vmatpush1.msra.mxu0 0.0
  %253 = vmatprep.subr.mxu0 0.0
  %254 = vmatpush1.msra.mxu0 0.0
  %255 = vmatprep.subr.mxu0 0.0
  %256 = vmatpush1.msra.mxu0 0.0
  %257 = vmatprep.subr.mxu0 0.0
  %258 = vmatpush1.msra.mxu0 0.0
  %259 = vmatprep.subr.mxu0 0.0
  %260 = vmatpush1.msra.mxu0 0.0
  %261 = vmatprep.subr.mxu0 0.0
  %262 = vmatpush1.msra.mxu0 0.0
  %263 = vmatprep.subr.mxu0 0.0
  %264 = vmatpush1.msra.mxu0 0.0
  %265 = vmatprep.subr.mxu0 0.0
  %266 = vmatpush1.msra.mxu0 0.0
  %267 = vmatprep.subr.mxu0 0.0
  %268 = vmatpush1.msra.mxu0 0.0
  %269 = vmatprep.subr.mxu0 0.0
  %270 = vmatpush1.msra.mxu0 0.0
  %271 = vmatprep.subr.mxu0 0.0
  %272 = vmatpush1.msra.mxu0 %v32
  %273 = vmatprep.subr.mxu0 0.0
  %274 = vmatpush2.msra.mxu0 0.0
  %275 = vmatprep.subr.mxu0 0.0
  %276 = vmatpush2.msra.mxu0 0.0
  %277 = vmatprep.subr.mxu0 0.0
  %278 = vmatpush2.msra.mxu0 0.0
  %279 = vmatprep.subr.mxu0 0.0
  %280 = vmatpush2.msra.mxu0 0.0
  %281 = vmatprep.subr.mxu0 0.0
  %282 = vmatpush2.msra.mxu0 0.0
  %283 = vmatprep.subr.mxu0 0.0
  %284 = vmatpush2.msra.mxu0 0.0
  %285 = vmatprep.subr.mxu0 0.0
  %286 = vmatpush2.msra.mxu0 0.0
  %287 = vmatprep.subr.mxu0 0.0
  %288 = vmatpush2.msra.mxu0 0.0
  %289 = vmatprep.subr.mxu0 0.0
  %290 = vmatpush2.msra.mxu0 0.0
  %291 = vmatprep.subr.mxu0 0.0
  %292 = vmatpush2.msra.mxu0 0.0
  %293 = vmatprep.subr.mxu0 0.0
  %294 = vmatpush2.msra.mxu0 0.0
  %295 = vmatprep.subr.mxu0 0.0
  %296 = vmatpush2.msra.mxu0 0.0
  %297 = vmatprep.subr.mxu0 0.0
  %298 = vmatpush2.msra.mxu0 0.0
  %299 = vmatprep.subr.mxu0 0.0
  %300 = vmatpush2.msra.mxu0 0.0
  %301 = vmatprep.subr.mxu0 0.0
  %302 = vmatpush2.msra.mxu0 0.0
  %303 = vmatprep.subr.mxu0 0.0
  %304 = vmatpush2.msra.mxu0 0.0
  %305 = vmatprep.mubr.f32.mxu0 0.0
  %306 = vmatmul.mubr.f32.gmra.mxu0 %v239
  %v307 = vpop.f32.mrf.mxu0
  %v308 = vadd.f32 0.0, %v307
  %v309 = vpop.f32.mrf.mxu0
  %310 = vdwg.mxu0
  %v312 = vsel %vm215, %v237, 0
  %314 = vmatprep.subr.mxu0 0.0
  %315 = vmatpush1.msra.mxu0 0.0
  %316 = vmatprep.subr.mxu0 0.0
  %317 = vmatpush1.msra.mxu0 0.0
  %318 = vmatprep.subr.mxu0 0.0
  %319 = vmatpush1.msra.mxu0 0.0
  %320 = vmatprep.subr.mxu0 0.0
  %321 = vmatpush1.msra.mxu0 0.0
  %322 = vmatprep.subr.mxu0 0.0
  %323 = vmatpush1.msra.mxu0 0.0
  %324 = vmatprep.subr.mxu0 0.0
  %325 = vmatpush1.msra.mxu0 0.0
  %326 = vmatprep.subr.mxu0 0.0
  %327 = vmatpush1.msra.mxu0 0.0
  %328 = vmatprep.subr.mxu0 0.0
  %329 = vmatpush1.msra.mxu0 0.0
  %330 = vmatprep.subr.mxu0 0.0
  %331 = vmatpush1.msra.mxu0 0.0
  %332 = vmatprep.subr.mxu0 0.0
  %333 = vmatpush1.msra.mxu0 0.0
  %334 = vmatprep.subr.mxu0 0.0
  %335 = vmatpush1.msra.mxu0 0.0
  %336 = vmatprep.subr.mxu0 0.0
  %337 = vmatpush1.msra.mxu0 0.0
  %338 = vmatprep.subr.mxu0 0.0
  %339 = vmatpush1.msra.mxu0 0.0
  %340 = vmatprep.subr.mxu0 0.0
  %341 = vmatpush1.msra.mxu0 0.0
  %342 = vmatprep.subr.mxu0 0.0
  %343 = vmatpush1.msra.mxu0 0.0
  %344 = vmatprep.subr.mxu0 0.0
  %345 = vmatpush1.msra.mxu0 %v33
  %346 = vmatprep.subr.mxu0 0.0
  %347 = vmatpush2.msra.mxu0 0.0
  %348 = vmatprep.subr.mxu0 0.0
  %349 = vmatpush2.msra.mxu0 0.0
  %350 = vmatprep.subr.mxu0 0.0
  %351 = vmatpush2.msra.mxu0 0.0
  %352 = vmatprep.subr.mxu0 0.0
  %353 = vmatpush2.msra.mxu0 0.0
  %354 = vmatprep.subr.mxu0 0.0
  %355 = vmatpush2.msra.mxu0 0.0
  %356 = vmatprep.subr.mxu0 0.0
  %357 = vmatpush2.msra.mxu0 0.0
  %358 = vmatprep.subr.mxu0 0.0
  %359 = vmatpush2.msra.mxu0 0.0
  %360 = vmatprep.subr.mxu0 0.0
  %361 = vmatpush2.msra.mxu0 0.0
  %362 = vmatprep.subr.mxu0 0.0
  %363 = vmatpush2.msra.mxu0 0.0
  %364 = vmatprep.subr.mxu0 0.0
  %365 = vmatpush2.msra.mxu0 0.0
  %366 = vmatprep.subr.mxu0 0.0
  %367 = vmatpush2.msra.mxu0 0.0
  %368 = vmatprep.subr.mxu0 0.0
  %369 = vmatpush2.msra.mxu0 0.0
  %370 = vmatprep.subr.mxu0 0.0
  %371 = vmatpush2.msra.mxu0 0.0
  %372 = vmatprep.subr.mxu0 0.0
  %373 = vmatpush2.msra.mxu0 0.0
  %374 = vmatprep.subr.mxu0 0.0
  %375 = vmatpush2.msra.mxu0 0.0
  %376 = vmatprep.subr.mxu0 0.0
  %377 = vmatpush2.msra.mxu0 0.0
  %378 = vmatprep.mubr.f32.mxu0 0.0
  %379 = vmatmul.mubr.f32.gmra.mxu0 %v312
  %v380 = vpop.f32.mrf.mxu0
  %v381 = vadd.f32 0.0, %v380
  %v382 = vpop.f32.mrf.mxu0
  %383 = vdwg.mxu0
  %v384 = vmul.f32 %v32, %v308
  %v385 = vmul.f32 %v33, %v381
  %v386 = vsub.f32 %v32, %v308
  %v387 = vsub.f32 %v33, %v381
  %390 = vrot.lane.b32.xlu0 %v308, 64
  %v391 = vpop.permute.xlu0 %390
  %392 = vrot.lane.b32.xlu0 %v381, 64
  %v393 = vpop.permute.xlu0 %392
  %398 = vrot.lane.b32.xlu0 %v386, 64
  %v399 = vpop.permute.xlu0 %398
  %400 = vrot.lane.b32.xlu0 %v387, 64
  %v401 = vpop.permute.xlu0 %400
  %v404 = vsel %vm68, %v32, %v391
  %v405 = vsel %vm68, %v33, %v393
  %v406 = vsel %vm68, %v384, %v399
  %v407 = vsel %vm68, %v385, %v401
  %v408 = vld [vmem:[%s3] sm:$0xff]
  %v409 = vld [vmem:[%s3 + $0x8] sm:$0xff]
  %v410 = vld [vmem:[%s3 + $0x10] sm:$0xff]
  %v411 = vld [vmem:[%s3 + $0x18] sm:$0xff]
  %v412 = vld [vmem:[%s3 + $0x20] sm:$0xff]
  %v413 = vld [vmem:[%s3 + $0x28] sm:$0xff]
  %v414 = vld [vmem:[%s3 + $0x30] sm:$0xff]
  %v415 = vld [vmem:[%s3 + $0x38] sm:$0xff]
  %v416 = vld [vmem:[%s3 + $0x40] sm:$0xff]
  %v417 = vld [vmem:[%s3 + $0x48] sm:$0xff]
  %v418 = vld [vmem:[%s3 + $0x50] sm:$0xff]
  %v419 = vld [vmem:[%s3 + $0x58] sm:$0xff]
  %v420 = vld [vmem:[%s3 + $0x60] sm:$0xff]
  %v421 = vld [vmem:[%s3 + $0x68] sm:$0xff]
  %v422 = vld [vmem:[%s3 + $0x70] sm:$0xff]
  %v423 = vld [vmem:[%s3 + $0x78] sm:$0xff]
  %v424 = vld [vmem:[%s3 + $0x80] sm:$0xff]
  %v425 = vld [vmem:[%s3 + $0x88] sm:$0xff]
  %v426 = vld [vmem:[%s3 + $0x90] sm:$0xff]
  %v427 = vld [vmem:[%s3 + $0x98] sm:$0xff]
  %v428 = vld [vmem:[%s3 + $0xa0] sm:$0xff]
  %v429 = vld [vmem:[%s3 + $0xa8] sm:$0xff]
  %v430 = vld [vmem:[%s3 + $0xb0] sm:$0xff]
  %v431 = vld [vmem:[%s3 + $0xb8] sm:$0xff]
  %v432 = vld [vmem:[%s3 + $0xc0] sm:$0xff]
  %v433 = vld [vmem:[%s3 + $0xc8] sm:$0xff]
  %v434 = vld [vmem:[%s3 + $0xd0] sm:$0xff]
  %v435 = vld [vmem:[%s3 + $0xd8] sm:$0xff]
  %v436 = vld [vmem:[%s3 + $0xe0] sm:$0xff]
  %v437 = vld [vmem:[%s3 + $0xe8] sm:$0xff]
  %v438 = vld [vmem:[%s3 + $0xf0] sm:$0xff]
  %v439 = vld [vmem:[%s3 + $0xf8] sm:$0xff]
  %v440 = vld [vmem:[%s4] sm:$0x1]
  %v442 = vlaneseq
  %v443 = vshrl.u32 %v442, 7
  %v444 = vsub.s32 0, %v443
  %v445 = vrot.slane %v440, %v444
  %447 = vmatprep.subr.mxu0 0.0
  %448 = vmatpush1.msra.mxu0 %v423
  %449 = vmatprep.subr.mxu0 0.0
  %450 = vmatpush1.msra.mxu0 %v422
  %451 = vmatprep.subr.mxu0 0.0
  %452 = vmatpush1.msra.mxu0 %v421
  %453 = vmatprep.subr.mxu0 0.0
  %454 = vmatpush1.msra.mxu0 %v420
  %455 = vmatprep.subr.mxu0 0.0
  %456 = vmatpush1.msra.mxu0 %v419
  %457 = vmatprep.subr.mxu0 0.0
  %458 = vmatpush1.msra.mxu0 %v418
  %459 = vmatprep.subr.mxu0 0.0
  %460 = vmatpush1.msra.mxu0 %v417
  %461 = vmatprep.subr.mxu0 0.0
  %462 = vmatpush1.msra.mxu0 %v416
  %463 = vmatprep.subr.mxu0 0.0
  %464 = vmatpush1.msra.mxu0 %v415
  %465 = vmatprep.subr.mxu0 0.0
  %466 = vmatpush1.msra.mxu0 %v414
  %467 = vmatprep.subr.mxu0 0.0
  %468 = vmatpush1.msra.mxu0 %v413
  %469 = vmatprep.subr.mxu0 0.0
  %470 = vmatpush1.msra.mxu0 %v412
  %471 = vmatprep.subr.mxu0 0.0
  %472 = vmatpush1.msra.mxu0 %v411
  %473 = vmatprep.subr.mxu0 0.0
  %474 = vmatpush1.msra.mxu0 %v410
  %475 = vmatprep.subr.mxu0 0.0
  %476 = vmatpush1.msra.mxu0 %v409
  %477 = vmatprep.subr.mxu0 0.0
  %478 = vmatpush1.msra.mxu0 %v408
  %479 = vmatprep.subr.mxu0 0.0
  %480 = vmatpush2.msra.mxu0 %v439
  %481 = vmatprep.subr.mxu0 0.0
  %482 = vmatpush2.msra.mxu0 %v438
  %483 = vmatprep.subr.mxu0 0.0
  %484 = vmatpush2.msra.mxu0 %v437
  %485 = vmatprep.subr.mxu0 0.0
  %486 = vmatpush2.msra.mxu0 %v436
  %487 = vmatprep.subr.mxu0 0.0
  %488 = vmatpush2.msra.mxu0 %v435
  %489 = vmatprep.subr.mxu0 0.0
  %490 = vmatpush2.msra.mxu0 %v434
  %491 = vmatprep.subr.mxu0 0.0
  %492 = vmatpush2.msra.mxu0 %v433
  %493 = vmatprep.subr.mxu0 0.0
  %494 = vmatpush2.msra.mxu0 %v432
  %495 = vmatprep.subr.mxu0 0.0
  %496 = vmatpush2.msra.mxu0 %v431
  %497 = vmatprep.subr.mxu0 0.0
  %498 = vmatpush2.msra.mxu0 %v430
  %499 = vmatprep.subr.mxu0 0.0
  %500 = vmatpush2.msra.mxu0 %v429
  %501 = vmatprep.subr.mxu0 0.0
  %502 = vmatpush2.msra.mxu0 %v428
  %503 = vmatprep.subr.mxu0 0.0
  %504 = vmatpush2.msra.mxu0 %v427
  %505 = vmatprep.subr.mxu0 0.0
  %506 = vmatpush2.msra.mxu0 %v426
  %507 = vmatprep.subr.mxu0 0.0
  %508 = vmatpush2.msra.mxu0 %v425
  %509 = vmatprep.subr.mxu0 0.0
  %510 = vmatpush2.msra.mxu0 %v424
  %511 = vmatprep.mubr.f32.mxu0 %v406
  %512 = vmatmul.mubr.f32.gmra.mxu0 %v404
  %v513 = vpop.f32.mrf.mxu0
  %v514 = vadd.f32 %v445, %v513
  %v515 = vpop.f32.mrf.mxu0
  %516 = vmatprep.mubr.f32.mxu0 %v407
  %517 = vmatmul.mubr.f32.gmra.mxu0 %v405
  %v518 = vpop.f32.mrf.mxu0
  %v519 = vadd.f32 %v445, %v518
  %v520 = vpop.f32.mrf.mxu0
  %521 = vdwg.mxu0
  %v522 = vtanh.pop %v514
  %v523 = vtanh.pop %v519
  %v524 = vxor.u32 %v514, 2147483648
  %v525 = vxor.u32 %v519, 2147483648
  %v526 = vmul.f32 %v524, 1.442695
  %v527 = vpow.pop %v526
  %v528 = vmul.f32 %v525, 1.442695
  %v529 = vpow.pop %v528
  %v530 = vadd.f32 %v527, 1.0
  %v531 = vadd.f32 %v529, 1.0
  %v532 = vrcp.pop %v530
  %v533 = vmul.f32 1.0, %v532
  %v534 = vrcp.pop %v531
  %v535 = vmul.f32 1.0, %v534
  %538 = vrot.lane.b32.xlu0 %v522, 64
  %v539 = vpop.permute.xlu0 %538
  %540 = vrot.lane.b32.xlu0 %v523, 64
  %v541 = vpop.permute.xlu0 %540
  %v544 = vmul.f32 %v533, %v539
  %v545 = vmul.f32 %v535, %v541
  %v546 = vsub.f32 1.0, %v533
  %v547 = vsub.f32 1.0, %v535
  %548 = vrot.lane.b32.xlu0 %v32, 64
  %v549 = vpop.permute.xlu0 %548
  %550 = vrot.lane.b32.xlu0 %v33, 64
  %v551 = vpop.permute.xlu0 %550
  %v554 = vmul.f32 %v546, %v549
  %v555 = vmul.f32 %v547, %v551
  %v556 = vadd.f32 %v544, %v554
  %v557 = vadd.f32 %v545, %v555
  %v558 = vld [vmem:[%s2] sm:$0x3]
  %vm559 = vcmask 58368
  %v560 = vsel %vm559, %v558, 0.0
  %561 = vadd.xlane.f32.xlu0 %v560
  %v562 = vpop.xlane.xlu0 %561
  %v563 = vmax.f32 %v562, 1.0
  %v564 = vlaneseq
  %v565 = vshrl.u32 %v564, 7
  %v566 = vsub.s32 0, %v565
  %v567 = vrot.slane %v558, %v566
  %569 = vbcast.lane.b32.xlu0 %v567, 256
  %v570 = vpop.permute.xlu0 %569
  %v571 = vlaneseq
  %v572 = vshrl.u32 %v571, 7
  %v573 = vsub.s32 1, %v572
  %v574 = vrot.slane %v558, %v573
  %576 = vbcast.lane.b32.xlu0 %v574, 256
  %v577 = vpop.permute.xlu0 %576
  %v578 = vmul.f32 %v556, %v570
  %v579 = vmul.f32 %v557, %v577
  %vm580 = vcmask 1048064
  %v581 = vsel %vm580, %v578, 0.0
  %v582 = vrot.slane %v581, 4
  %v583 = vadd.f32 %v581, %v582
  %v584 = vrot.slane %v583, 2
  %v585 = vadd.f32 %v583, %v584
  %v586 = vrot.slane %v585, 1
  %v587 = vadd.f32 %v585, %v586
  %v588 = vsel %vm580, %v579, 0.0
  %v589 = vrot.slane %v588, 4
  %v590 = vadd.f32 %v588, %v589
  %v591 = vrot.slane %v590, 2
  %v592 = vadd.f32 %v590, %v591
  %v593 = vrot.slane %v592, 1
  %v594 = vadd.f32 %v592, %v593
  %v596 = vrot.slane %v563, 1
  %v599 = vrcp.pop %v563
  %v600 = vmul.f32 %v587, %v599
  %v601 = vrcp.pop %v596
  %v602 = vmul.f32 %v594, %v601
  %v603 = vld [vmem:[%s5] sm:$0xff]
  %v604 = vld [vmem:[%s5 + $0x8] sm:$0xff]
  %v605 = vld [vmem:[%s5 + $0x10] sm:$0xff]
  %v606 = vld [vmem:[%s5 + $0x18] sm:$0xff]
  %v607 = vld [vmem:[%s5 + $0x20] sm:$0xff]
  %v608 = vld [vmem:[%s5 + $0x28] sm:$0xff]
  %v609 = vld [vmem:[%s5 + $0x30] sm:$0xff]
  %v610 = vld [vmem:[%s5 + $0x38] sm:$0xff]
  %v611 = vld [vmem:[%s6] sm:$0x1]
  %v613 = vlaneseq
  %v614 = vshrl.u32 %v613, 7
  %v615 = vsub.s32 0, %v614
  %v616 = vrot.slane %v611, %v615
  %v620 = vrot.slane %v602, 7
  %vm621 = vcmask 1041409
  %v622 = vsel %vm621, %v620, %v600
  %623 = vrot.lane.b32.xlu0 %v622, 64
  %v624 = vpop.permute.xlu0 %623
  %v625 = vsel %vm68, %v624, 0
  %627 = vmatprep.subr.mxu0 0.0
  %628 = vmatpush1.msra.mxu0 0.0
  %629 = vmatprep.subr.mxu0 0.0
  %630 = vmatpush1.msra.mxu0 0.0
  %631 = vmatprep.subr.mxu0 0.0
  %632 = vmatpush1.msra.mxu0 0.0
  %633 = vmatprep.subr.mxu0 0.0
  %634 = vmatpush1.msra.mxu0 0.0
  %635 = vmatprep.subr.mxu0 0.0
  %636 = vmatpush1.msra.mxu0 0.0
  %637 = vmatprep.subr.mxu0 0.0
  %638 = vmatpush1.msra.mxu0 0.0
  %639 = vmatprep.subr.mxu0 0.0
  %640 = vmatpush1.msra.mxu0 0.0
  %641 = vmatprep.subr.mxu0 0.0
  %642 = vmatpush1.msra.mxu0 0.0
  %643 = vmatprep.subr.mxu0 0.0
  %644 = vmatpush1.msra.mxu0 %v610
  %645 = vmatprep.subr.mxu0 0.0
  %646 = vmatpush1.msra.mxu0 %v609
  %647 = vmatprep.subr.mxu0 0.0
  %648 = vmatpush1.msra.mxu0 %v608
  %649 = vmatprep.subr.mxu0 0.0
  %650 = vmatpush1.msra.mxu0 %v607
  %651 = vmatprep.subr.mxu0 0.0
  %652 = vmatpush1.msra.mxu0 %v606
  %653 = vmatprep.subr.mxu0 0.0
  %654 = vmatpush1.msra.mxu0 %v605
  %655 = vmatprep.subr.mxu0 0.0
  %656 = vmatpush1.msra.mxu0 %v604
  %657 = vmatprep.subr.mxu0 0.0
  %658 = vmatpush1.msra.mxu0 %v603
  %659 = vmatprep.subr.mxu0 0.0
  %660 = vmatpush2.msra.mxu0 0.0
  %661 = vmatprep.subr.mxu0 0.0
  %662 = vmatpush2.msra.mxu0 0.0
  %663 = vmatprep.subr.mxu0 0.0
  %664 = vmatpush2.msra.mxu0 0.0
  %665 = vmatprep.subr.mxu0 0.0
  %666 = vmatpush2.msra.mxu0 0.0
  %667 = vmatprep.subr.mxu0 0.0
  %668 = vmatpush2.msra.mxu0 0.0
  %669 = vmatprep.subr.mxu0 0.0
  %670 = vmatpush2.msra.mxu0 0.0
  %671 = vmatprep.subr.mxu0 0.0
  %672 = vmatpush2.msra.mxu0 0.0
  %673 = vmatprep.subr.mxu0 0.0
  %674 = vmatpush2.msra.mxu0 0.0
  %675 = vmatprep.subr.mxu0 0.0
  %676 = vmatpush2.msra.mxu0 0.0
  %677 = vmatprep.subr.mxu0 0.0
  %678 = vmatpush2.msra.mxu0 0.0
  %679 = vmatprep.subr.mxu0 0.0
  %680 = vmatpush2.msra.mxu0 0.0
  %681 = vmatprep.subr.mxu0 0.0
  %682 = vmatpush2.msra.mxu0 0.0
  %683 = vmatprep.subr.mxu0 0.0
  %684 = vmatpush2.msra.mxu0 0.0
  %685 = vmatprep.subr.mxu0 0.0
  %686 = vmatpush2.msra.mxu0 0.0
  %687 = vmatprep.subr.mxu0 0.0
  %688 = vmatpush2.msra.mxu0 0.0
  %689 = vmatprep.subr.mxu0 0.0
  %690 = vmatpush2.msra.mxu0 0.0
  %691 = vmatprep.mubr.f32.mxu0 0.0
  %692 = vmatmul.mubr.f32.gmra.mxu0 %v625
  %v693 = vpop.f32.mrf.mxu0
  %v694 = vadd.f32 %v616, %v693
  %v695 = vpop.f32.mrf.mxu0
  %696 = vdwg.mxu0
  %v697 = vmax.f32 %v694, 0.0
  %v698 = vld [vmem:[%s7] sm:$0xff]
  %v699 = vld [vmem:[%s7 + $0x8] sm:$0xff]
  %v700 = vld [vmem:[%s7 + $0x10] sm:$0xff]
  %v701 = vld [vmem:[%s7 + $0x18] sm:$0xff]
  %v702 = vld [vmem:[%s7 + $0x20] sm:$0xff]
  %v703 = vld [vmem:[%s7 + $0x28] sm:$0xff]
  %v704 = vld [vmem:[%s7 + $0x30] sm:$0xff]
  %v705 = vld [vmem:[%s7 + $0x38] sm:$0xff]
  %v706 = vld [vmem:[%s7 + $0x40] sm:$0xff]
  %v707 = vld [vmem:[%s7 + $0x48] sm:$0xff]
  %v708 = vld [vmem:[%s7 + $0x50] sm:$0xff]
  %v709 = vld [vmem:[%s7 + $0x58] sm:$0xff]
  %v710 = vld [vmem:[%s8] sm:$0x1]
  %v712 = vlaneseq
  %v713 = vshrl.u32 %v712, 7
  %v714 = vsub.s32 0, %v713
  %v715 = vrot.slane %v710, %v714
  %vm717 = vcmask 785408
  %v719 = vsel %vm717, %v697, 0
  %721 = vmatprep.subr.mxu0 0.0
  %722 = vmatpush1.msra.mxu0 0.0
  %723 = vmatprep.subr.mxu0 0.0
  %724 = vmatpush1.msra.mxu0 0.0
  %725 = vmatprep.subr.mxu0 0.0
  %726 = vmatpush1.msra.mxu0 0.0
  %727 = vmatprep.subr.mxu0 0.0
  %728 = vmatpush1.msra.mxu0 0.0
  %729 = vmatprep.subr.mxu0 0.0
  %730 = vmatpush1.msra.mxu0 %v709
  %731 = vmatprep.subr.mxu0 0.0
  %732 = vmatpush1.msra.mxu0 %v708
  %733 = vmatprep.subr.mxu0 0.0
  %734 = vmatpush1.msra.mxu0 %v707
  %735 = vmatprep.subr.mxu0 0.0
  %736 = vmatpush1.msra.mxu0 %v706
  %737 = vmatprep.subr.mxu0 0.0
  %738 = vmatpush1.msra.mxu0 %v705
  %739 = vmatprep.subr.mxu0 0.0
  %740 = vmatpush1.msra.mxu0 %v704
  %741 = vmatprep.subr.mxu0 0.0
  %742 = vmatpush1.msra.mxu0 %v703
  %743 = vmatprep.subr.mxu0 0.0
  %744 = vmatpush1.msra.mxu0 %v702
  %745 = vmatprep.subr.mxu0 0.0
  %746 = vmatpush1.msra.mxu0 %v701
  %747 = vmatprep.subr.mxu0 0.0
  %748 = vmatpush1.msra.mxu0 %v700
  %749 = vmatprep.subr.mxu0 0.0
  %750 = vmatpush1.msra.mxu0 %v699
  %751 = vmatprep.subr.mxu0 0.0
  %752 = vmatpush1.msra.mxu0 %v698
  %753 = vmatprep.subr.mxu0 0.0
  %754 = vmatpush2.msra.mxu0 0.0
  %755 = vmatprep.subr.mxu0 0.0
  %756 = vmatpush2.msra.mxu0 0.0
  %757 = vmatprep.subr.mxu0 0.0
  %758 = vmatpush2.msra.mxu0 0.0
  %759 = vmatprep.subr.mxu0 0.0
  %760 = vmatpush2.msra.mxu0 0.0
  %761 = vmatprep.subr.mxu0 0.0
  %762 = vmatpush2.msra.mxu0 0.0
  %763 = vmatprep.subr.mxu0 0.0
  %764 = vmatpush2.msra.mxu0 0.0
  %765 = vmatprep.subr.mxu0 0.0
  %766 = vmatpush2.msra.mxu0 0.0
  %767 = vmatprep.subr.mxu0 0.0
  %768 = vmatpush2.msra.mxu0 0.0
  %769 = vmatprep.subr.mxu0 0.0
  %770 = vmatpush2.msra.mxu0 0.0
  %771 = vmatprep.subr.mxu0 0.0
  %772 = vmatpush2.msra.mxu0 0.0
  %773 = vmatprep.subr.mxu0 0.0
  %774 = vmatpush2.msra.mxu0 0.0
  %775 = vmatprep.subr.mxu0 0.0
  %776 = vmatpush2.msra.mxu0 0.0
  %777 = vmatprep.subr.mxu0 0.0
  %778 = vmatpush2.msra.mxu0 0.0
  %779 = vmatprep.subr.mxu0 0.0
  %780 = vmatpush2.msra.mxu0 0.0
  %781 = vmatprep.subr.mxu0 0.0
  %782 = vmatpush2.msra.mxu0 0.0
  %783 = vmatprep.subr.mxu0 0.0
  %784 = vmatpush2.msra.mxu0 0.0
  %785 = vmatprep.mubr.f32.mxu0 0.0
  %786 = vmatmul.mubr.f32.gmra.mxu0 %v719
  %v787 = vpop.f32.mrf.mxu0
  %v788 = vadd.f32 %v715, %v787
  %v789 = vpop.f32.mrf.mxu0
  %790 = vdwg.mxu0
  %vm791 = vcmask 91136
  %792 = vst.msk [vmem:[%s9] sm:$0x3] %vm791, %v788
  // Predicated region
  $region38: #{model_forward.3} parent=0 // pred_check
    _
  $region39: #{model_forward.3} parent=0 // pred_check_branch
    %794 = sbr.rel (0) target = $region41
  $region40: #{model_forward.3} parent=0 // pred_region
    _
  $region41: #{model_forward.3} parent=0 // pred_fallthru
    _
  // Predicated region
  $region42: #{model_forward.3} parent=0 // pred_check
    _
  $region43: #{model_forward.3} parent=0 // pred_check_branch
    %796 = sbr.rel (0) target = $region45
  $region44: #{model_forward.3} parent=0 // pred_region
    _
  $region45: #{model_forward.3} parent=0 // pred_fallthru
    _

</llo_original>
